<compile_context>
chip_gen: v7x
topology: tpu7x:2x2x1
jax: 0.10.0
libtpu: 0.0.40
codegen_flags: <defaults>
</compile_context>

<pallas_src>
import math

import jax
import jax.numpy as jnp
from jax import lax
from jax.experimental import pallas as pl
from jax.experimental.pallas import tpu as pltpu

LN_EPS = 1e-5  # nn.LayerNorm default


def _make_kernel(e_chunk, n_chunks):
    """Kernel over one (TM, D) row tile; optionally chunks the expanded dim E."""

    def kernel(x_ref, gamma_ref, beta_ref, w1_ref, b1_ref, w2_ref, b2_ref, o_ref):
        x = x_ref[...].astype(jnp.float32)

        # LayerNorm over the channel (lane) dim, statistics in f32.
        mean = jnp.mean(x, axis=-1, keepdims=True)
        centered = x - mean
        var = jnp.mean(centered * centered, axis=-1, keepdims=True)
        xn = centered * lax.rsqrt(var + LN_EPS)
        xn = xn * gamma_ref[...] + beta_ref[...]
        xn_c = xn.astype(w1_ref.dtype)  # bf16 MXU operand

        # expand_dim (D -> E) + ReLU + out_proj (E -> D), optionally chunked over E
        # so the (TM, e_chunk) intermediate stays small; f32 accumulation throughout.
        acc = None
        for c in range(n_chunks):  # static Python loop; traced once
            c0 = c * e_chunk
            h = jnp.dot(xn_c, w1_ref[:, c0:c0 + e_chunk],
                        preferred_element_type=jnp.float32) + b1_ref[:, c0:c0 + e_chunk]
            h = jnp.maximum(h, 0.0)
            part = jnp.dot(h.astype(w2_ref.dtype), w2_ref[c0:c0 + e_chunk, :],
                           preferred_element_type=jnp.float32)
            acc = part if acc is None else acc + part

        o_ref[...] = (acc + b2_ref[...]).astype(o_ref.dtype)

    return kernel


def _round_up(x, m):
    return ((x + m - 1) // m) * m


def _vmem_capacity_bytes():
    """Physical VMEM of the attached TPU; conservative 64 MiB fallback (v7x-class)."""
    try:
        info = pltpu.get_tpu_info()
        cap = getattr(info, "vmem_capacity_bytes", None)
        if cap:
            return int(cap)
    except Exception:
        pass
    return 64 * 1024 * 1024


def transition_base(pair_rep, gamma, beta, w1, b1, w2, b2, *,
                    tile_m=None, e_chunks=None, compute_dtype=jnp.bfloat16):
    """pair_rep: [..., D].  w1: (D, E), w2: (E, D) stored as (in, out) for x @ W."""
    D = pair_rep.shape[-1]
    E = w1.shape[1]
    lead_shape = pair_rep.shape[:-1]
    M = int(math.prod(lead_shape)) if lead_shape else 1

    in_b = jnp.dtype(pair_rep.dtype).itemsize
    out_b = in_b                                     # output keeps the input dtype
    w_b = jnp.dtype(compute_dtype).itemsize
    sublane = {4: 8, 2: 16, 1: 32}.get(in_b, 8)      # packed-sublane multiple of I/O dtype

    # ---- generation-aware budgets --------------------------------------------
    cap = _vmem_capacity_bytes()
    if cap >= 100 * 1024 * 1024:          # v5e / v6e: 128 MiB VMEM, single TensorCore
        default_tile, vmem_budget, vmem_cap, multi_tc = 2048, 96 << 20, 110 << 20, False
    else:                                 # v7x-class: 64 MiB VMEM, 2 TensorCores
        default_tile, vmem_budget, vmem_cap, multi_tc = 1024, 40 << 20, 56 << 20, True

    # ---- tile selection -------------------------------------------------------
    if tile_m is None:
        tile_m = default_tile
        if multi_tc:
            # >= 4 grid steps so each of the two TensorCores gets >= 2 (pipelined) steps.
            tile_m = min(tile_m, _round_up(pl.cdiv(M, 4), sublane))
    tile_m = max(sublane, _round_up(tile_m, sublane))
    # Never exceed the sublane-rounded-down row count (keeps block <= array whenever
    # possible; the tail block, if any, is a standard ragged block).
    tile_m = min(tile_m, max(sublane, (M // sublane) * sublane))

    # ---- E-chunking of the (TM, E) intermediate (v7x VMEM-pressure path) ------
    if e_chunks is None:
        e_chunks = 1
        H_BUDGET = 16 << 20
        while (tile_m * (E // e_chunks) * 4 > H_BUDGET
               and E % (2 * e_chunks) == 0
               and (E // (2 * e_chunks)) % 128 == 0):
            e_chunks *= 2
    assert E % e_chunks == 0, "e_chunks must divide the expanded dim"
    e_chunk = E // e_chunks

    def vmem_estimate(tm):
        io = 2 * tm * D * (in_b + out_b)            # double-buffered x + out tiles
        weights = 2 * (D * E + E * D) * w_b         # w1 + w2 (default double-buffer)
        params = 2 * (2 * D + E + D) * 4            # gamma/beta/b1/b2
        interm = tm * e_chunk * 4 + 3 * tm * D * 4  # h chunk + f32 temporaries
        return io + weights + params + interm

    while tile_m > sublane and vmem_estimate(tile_m) > vmem_budget:
        tile_m = max(sublane, _round_up(tile_m // 2, sublane))

    grid_m = pl.cdiv(M, tile_m)

    # ---- flatten rows (no padding: Pallas handles the ragged last block) ------
    x2d = pair_rep.reshape(M, D)

    # Params as 2-D; weights in the MXU compute dtype (ideally pre-cast by the
    # caller once at model setup); LN params / biases in f32.
    gamma2 = gamma.astype(jnp.float32).reshape(1, D)
    beta2 = beta.astype(jnp.float32).reshape(1, D)
    w1c = w1 if w1.dtype == compute_dtype else w1.astype(compute_dtype)
    w2c = w2 if w2.dtype == compute_dtype else w2.astype(compute_dtype)
    b1_2 = b1.astype(jnp.float32).reshape(1, E)
    b2_2 = b2.astype(jnp.float32).reshape(1, D)

    full = lambda shape: pl.BlockSpec(shape, lambda i: (0, 0))

    cost = pl.CostEstimate(
        flops=4 * M * D * E,                         # two matmuls, 2*M*D*E each
        transcendentals=M,                           # one rsqrt per row
        bytes_accessed=int(M * D * in_b + M * D * out_b
                           + 2 * D * E * w_b + (3 * D + E) * 4),
    )
    vmem_limit = int(min(max(int(1.5 * vmem_estimate(tile_m)), 32 << 20), vmem_cap))

    out = pl.pallas_call(
        _make_kernel(e_chunk, e_chunks),
        out_shape=jax.ShapeDtypeStruct((M, D), pair_rep.dtype),
        grid_spec=pltpu.PrefetchScalarGridSpec(
            num_scalar_prefetch=0,
            grid=(grid_m,),
            in_specs=[
                pl.BlockSpec((tile_m, D), lambda i: (i, 0)),  # x row tile
                full((1, D)),   # gamma
                full((1, D)),   # beta
                full((D, E)),   # w1 (resident; constant index -> no re-DMA)
                full((1, E)),   # b1
                full((E, D)),   # w2 (resident)
                full((1, D)),   # b2
            ],
            out_specs=pl.BlockSpec((tile_m, D), lambda i: (i, 0)),
        ),
        compiler_params=pltpu.CompilerParams(
            dimension_semantics=("parallel",),
            vmem_limit_bytes=vmem_limit,
        ),
        cost_estimate=cost,
    )(x2d, gamma2, beta2, w1c, b1_2, w2c, b2_2)

    return out.reshape(*lead_shape, D)


def _reference(pair_rep, gamma, beta, w1, b1, w2, b2, *, matmul_dtype=jnp.float32):
    x = pair_rep.astype(jnp.float32)
    mean = jnp.mean(x, axis=-1, keepdims=True)
    centered = x - mean
    var = jnp.mean(centered * centered, axis=-1, keepdims=True)
    xn = centered * lax.rsqrt(var + LN_EPS) * gamma + beta
    h = jnp.dot(xn.astype(matmul_dtype), w1.astype(matmul_dtype),
                preferred_element_type=jnp.float32) + b1
    h = jnp.maximum(h, 0.0)
    y = jnp.dot(h.astype(matmul_dtype), w2.astype(matmul_dtype),
                preferred_element_type=jnp.float32) + b2
    return y.astype(pair_rep.dtype)


if __name__ == "__main__":
    # AF2 pair-representation transition at small-but-realistic shapes:
    # pair_rep [B, N, N, D] with D=128 (fills the 128-lane vreg), dim_scale=4.
    B, N, D, dim_scale = 2, 16, 128, 4
    E = dim_scale * D

    key = jax.random.PRNGKey(0)
    kx, kg, kb, kw1, kb1, kw2, kb2 = jax.random.split(key, 7)

    pair_rep = jax.random.normal(kx, (B, N, N, D), dtype=jnp.float32)

    gamma = 1.0 + 0.1 * jax.random.normal(kg, (D,), dtype=jnp.float32)
    beta = 0.1 * jax.random.normal(kb, (D,), dtype=jnp.float32)
    # Weights stored as (in, out) so the kernel computes x @ W + b
    # (== PyTorch's x @ W.T + b with W of shape (out, in)).
    w1 = jax.random.normal(kw1, (D, E), dtype=jnp.float32) * (1.0 / math.sqrt(D))
    b1 = 0.05 * jax.random.normal(kb1, (E,), dtype=jnp.float32)
    w2 = jax.random.normal(kw2, (E, D), dtype=jnp.float32) * (1.0 / math.sqrt(E))
    b2 = 0.05 * jax.random.normal(kb2, (D,), dtype=jnp.float32)

    # One-time "model setup": pre-cast MXU weights to bf16 (hoisted out of the call).
    w1_bf = w1.astype(jnp.bfloat16)
    w2_bf = w2.astype(jnp.bfloat16)

    out = jax.block_until_ready(
        transition_base(pair_rep, gamma, beta, w1_bf, b1, w2_bf, b2))
    assert out.shape == pair_rep.shape and out.dtype == pair_rep.dtype

    # Tight check vs. a reference with identical bf16-operand / f32-accum matmuls.
    ref_mirror = _reference(pair_rep, gamma, beta, w1, b1, w2, b2,
                            matmul_dtype=jnp.bfloat16)
    assert jnp.allclose(out, ref_mirror, atol=5e-3, rtol=5e-3), "mismatch vs mirrored ref"

    # Loose sanity check vs. the pure-f32 reference (bf16 MXU operands bound the error).
    ref_f32 = _reference(pair_rep, gamma, beta, w1, b1, w2, b2,
                         matmul_dtype=jnp.float32)
    assert jnp.allclose(out, ref_f32, atol=1e-1, rtol=1e-1), "mismatch vs f32 ref"

    # Ragged row count (no pad/slice round-trip): 1*3*7 = 21 rows with tile_m=16
    # exercises the partial tail block that replaced the jnp.pad path.
    x_ragged = pair_rep[:1, :3, :7, :]
    out_r = jax.block_until_ready(
        transition_base(x_ragged, gamma, beta, w1_bf, b1, w2_bf, b2, tile_m=16))
    assert jnp.allclose(out_r, ref_mirror[:1, :3, :7, :], atol=5e-3, rtol=5e-3), \
        "mismatch on ragged rows"

    # E-chunked second matmul (v7x VMEM-pressure path) matches the single-shot result.
    out_c = jax.block_until_ready(
        transition_base(pair_rep, gamma, beta, w1_bf, b1, w2_bf, b2, e_chunks=2))
    assert jnp.allclose(out_c, ref_mirror, atol=5e-3, rtol=5e-3), "mismatch (E-chunked)"

    print("KERNEL_OK")
</pallas_src>

<mosaic_0001>
module attributes {stable_mosaic.version = 11 : i64} {
  func.func @kernel(%arg0: i32, %arg1: memref<128x128xf32, #tpu.memory_space<vmem>>, %arg2: memref<1x128xf32, #tpu.memory_space<vmem>>, %arg3: memref<1x128xf32, #tpu.memory_space<vmem>>, %arg4: memref<128x512xbf16, #tpu.memory_space<vmem>>, %arg5: memref<1x512xf32, #tpu.memory_space<vmem>>, %arg6: memref<512x128xbf16, #tpu.memory_space<vmem>>, %arg7: memref<1x128xf32, #tpu.memory_space<vmem>>, %arg8: memref<128x128xf32, #tpu.memory_space<vmem>>) attributes {dimension_semantics = [#tpu.dimension_semantics<parallel>], iteration_bounds = array<i64: 4>, scalar_prefetch = 0 : i64, scratch_operands = 0 : i64, tpu.core_type = #tpu.core_type<tc>, window_params = [{transform_indices = @transform_0, window_bounds = array<i64: 128, 128>}, {pipeline_mode = #tpu.pipeline_mode<synchronous>, transform_indices = @transform_1, window_bounds = array<i64: 1, 128>}, {pipeline_mode = #tpu.pipeline_mode<synchronous>, transform_indices = @transform_2, window_bounds = array<i64: 1, 128>}, {pipeline_mode = #tpu.pipeline_mode<synchronous>, transform_indices = @transform_3, window_bounds = array<i64: 128, 512>}, {pipeline_mode = #tpu.pipeline_mode<synchronous>, transform_indices = @transform_4, window_bounds = array<i64: 1, 512>}, {pipeline_mode = #tpu.pipeline_mode<synchronous>, transform_indices = @transform_5, window_bounds = array<i64: 512, 128>}, {pipeline_mode = #tpu.pipeline_mode<synchronous>, transform_indices = @transform_6, window_bounds = array<i64: 1, 128>}, {transform_indices = @transform_7, window_bounds = array<i64: 128, 128>}]} {
    %c0 = arith.constant 0 : index
    %c0_0 = arith.constant 0 : index
    %0 = vector.load %arg1[%c0, %c0_0] : memref<128x128xf32, #tpu.memory_space<vmem>>, vector<128x128xf32>
    %cst = arith.constant dense<0.000000e+00> : vector<128xf32>
    %1 = vector.multi_reduction <add>, %0, %cst [1] : vector<128x128xf32> to vector<128xf32>
    %2 = vector.shape_cast %1 : vector<128xf32> to vector<128x1xf32>
    %cst_1 = arith.constant 1.280000e+02 : f32
    %3 = vector.broadcast %cst_1 : f32 to vector<128x1xf32>
    %4 = arith.divf %2, %3 : vector<128x1xf32>
    %5 = vector.broadcast %4 : vector<128x1xf32> to vector<128x128xf32>
    %6 = arith.subf %0, %5 : vector<128x128xf32>
    %7 = arith.mulf %6, %6 : vector<128x128xf32>
    %cst_2 = arith.constant dense<0.000000e+00> : vector<128xf32>
    %8 = vector.multi_reduction <add>, %7, %cst_2 [1] : vector<128x128xf32> to vector<128xf32>
    %9 = vector.shape_cast %8 : vector<128xf32> to vector<128x1xf32>
    %cst_3 = arith.constant 1.280000e+02 : f32
    %10 = vector.broadcast %cst_3 : f32 to vector<128x1xf32>
    %11 = arith.divf %9, %10 : vector<128x1xf32>
    %cst_4 = arith.constant 9.99999974E-6 : f32
    %12 = vector.broadcast %cst_4 : f32 to vector<128x1xf32>
    %13 = arith.addf %11, %12 : vector<128x1xf32>
    %14 = math.rsqrt %13 : vector<128x1xf32>
    %15 = vector.broadcast %14 : vector<128x1xf32> to vector<128x128xf32>
    %16 = arith.mulf %6, %15 : vector<128x128xf32>
    %c0_5 = arith.constant 0 : index
    %c0_6 = arith.constant 0 : index
    %17 = vector.load %arg2[%c0_5, %c0_6] : memref<1x128xf32, #tpu.memory_space<vmem>>, vector<1x128xf32>
    %18 = vector.broadcast %17 : vector<1x128xf32> to vector<128x128xf32>
    %19 = arith.mulf %16, %18 : vector<128x128xf32>
    %c0_7 = arith.constant 0 : index
    %c0_8 = arith.constant 0 : index
    %20 = vector.load %arg3[%c0_7, %c0_8] : memref<1x128xf32, #tpu.memory_space<vmem>>, vector<1x128xf32>
    %21 = vector.broadcast %20 : vector<1x128xf32> to vector<128x128xf32>
    %22 = arith.addf %19, %21 : vector<128x128xf32>
    %23 = arith.truncf %22 : vector<128x128xf32> to vector<128x128xbf16>
    %c0_9 = arith.constant 0 : index
    %c0_10 = arith.constant 0 : index
    %24 = vector.load %arg4[%c0_9, %c0_10] : memref<128x512xbf16, #tpu.memory_space<vmem>>, vector<128x512xbf16>
    %cst_11 = arith.constant dense<0.000000e+00> : vector<128x512xf32>
    %25 = tpu.matmul %23, %24, %cst_11 {dimension_numbers = #tpu.dot_dimension_numbers<[1], [0], [0], [1], [0, 0, 1, 1], [], []>} : vector<128x128xbf16>, vector<128x512xbf16>, vector<128x512xf32> -> vector<128x512xf32>
    %c0_12 = arith.constant 0 : index
    %c0_13 = arith.constant 0 : index
    %26 = vector.load %arg5[%c0_12, %c0_13] : memref<1x512xf32, #tpu.memory_space<vmem>>, vector<1x512xf32>
    %27 = vector.broadcast %26 : vector<1x512xf32> to vector<128x512xf32>
    %28 = arith.addf %25, %27 : vector<128x512xf32>
    %cst_14 = arith.constant 0.000000e+00 : f32
    %29 = vector.broadcast %cst_14 : f32 to vector<128x512xf32>
    %30 = arith.maximumf %28, %29 : vector<128x512xf32>
    %31 = arith.truncf %30 : vector<128x512xf32> to vector<128x512xbf16>
    %c0_15 = arith.constant 0 : index
    %c0_16 = arith.constant 0 : index
    %32 = vector.load %arg6[%c0_15, %c0_16] : memref<512x128xbf16, #tpu.memory_space<vmem>>, vector<512x128xbf16>
    %cst_17 = arith.constant dense<0.000000e+00> : vector<128x128xf32>
    %33 = tpu.matmul %31, %32, %cst_17 {dimension_numbers = #tpu.dot_dimension_numbers<[1], [0], [0], [1], [0, 0, 1, 1], [], []>} : vector<128x512xbf16>, vector<512x128xbf16>, vector<128x128xf32> -> vector<128x128xf32>
    %c0_18 = arith.constant 0 : index
    %c0_19 = arith.constant 0 : index
    %34 = vector.load %arg7[%c0_18, %c0_19] : memref<1x128xf32, #tpu.memory_space<vmem>>, vector<1x128xf32>
    %35 = vector.broadcast %34 : vector<1x128xf32> to vector<128x128xf32>
    %36 = arith.addf %33, %35 : vector<128x128xf32>
    %c0_20 = arith.constant 0 : index
    %c0_21 = arith.constant 0 : index
    %37 = vector.load %arg8[%c0_20, %c0_21] : memref<128x128xf32, #tpu.memory_space<vmem>>, vector<128x128xf32>
    tpu.vector_store %arg8[%c0_20, %c0_21], %36 {strides = array<i32>} : memref<128x128xf32, #tpu.memory_space<vmem>>, vector<128x128xf32>,
    return
  }
  func.func @transform_0(%arg0: i32) -> (i32, i32) {
    %c0_i32 = arith.constant 0 : i32
    %c0_i32_0 = arith.constant 0 : i32
    return %arg0, %c0_i32 : i32, i32
  }
  func.func @transform_1(%arg0: i32) -> (i32, i32) {
    %c0_i32 = arith.constant 0 : i32
    %c0_i32_0 = arith.constant 0 : i32
    %c0_i32_1 = arith.constant 0 : i32
    return %c0_i32, %c0_i32_0 : i32, i32
  }
  func.func @transform_2(%arg0: i32) -> (i32, i32) {
    %c0_i32 = arith.constant 0 : i32
    %c0_i32_0 = arith.constant 0 : i32
    %c0_i32_1 = arith.constant 0 : i32
    return %c0_i32, %c0_i32_0 : i32, i32
  }
  func.func @transform_3(%arg0: i32) -> (i32, i32) {
    %c0_i32 = arith.constant 0 : i32
    %c0_i32_0 = arith.constant 0 : i32
    %c0_i32_1 = arith.constant 0 : i32
    return %c0_i32, %c0_i32_0 : i32, i32
  }
  func.func @transform_4(%arg0: i32) -> (i32, i32) {
    %c0_i32 = arith.constant 0 : i32
    %c0_i32_0 = arith.constant 0 : i32
    %c0_i32_1 = arith.constant 0 : i32
    return %c0_i32, %c0_i32_0 : i32, i32
  }
  func.func @transform_5(%arg0: i32) -> (i32, i32) {
    %c0_i32 = arith.constant 0 : i32
    %c0_i32_0 = arith.constant 0 : i32
    %c0_i32_1 = arith.constant 0 : i32
    return %c0_i32, %c0_i32_0 : i32, i32
  }
  func.func @transform_6(%arg0: i32) -> (i32, i32) {
    %c0_i32 = arith.constant 0 : i32
    %c0_i32_0 = arith.constant 0 : i32
    %c0_i32_1 = arith.constant 0 : i32
    return %c0_i32, %c0_i32_0 : i32, i32
  }
  func.func @transform_7(%arg0: i32) -> (i32, i32) {
    %c0_i32 = arith.constant 0 : i32
    %c0_i32_0 = arith.constant 0 : i32
    return %arg0, %c0_i32 : i32, i32
  }
}

</mosaic_0001>

<llo_original>
// kernel: tpu_custom_call.1
$region0: #{tpu_custom_call.1}
  #allocation0 [shape = 'u32[]', space=smem, size = 0x4, offset = 0x4, fixed_abs, tag = 'smem constant byte address 0x4 - core index']
  #allocation1 [shape = 'u32[144,128]{1,0:T(1,128)}', space=vmem, size = 0x12000, scoped, tag = 'internal scratch']
  %s0 = inlined_call_operand.hbm [shape: f32[512,128], index: 0, kind: input, shape index: {}]
  %s1 = inlined_call_operand.vmem [shape: f32[1,128], index: 1, kind: input, shape index: {}]
  %s2 = inlined_call_operand.vmem [shape: f32[1,128], index: 2, kind: input, shape index: {}]
  %s3 = inlined_call_operand.hbm [shape: bf16[128,512], index: 3, kind: input, shape index: {}]
  %s4 = inlined_call_operand.vmem [shape: f32[1,512], index: 4, kind: input, shape index: {}]
  %s5 = inlined_call_operand.hbm [shape: bf16[512,128], index: 5, kind: input, shape index: {}]
  %s6 = inlined_call_operand.vmem [shape: f32[1,128], index: 6, kind: input, shape index: {}]
  %s7 = inlined_call_operand.hbm [shape: f32[512,128], index: 7, kind: output, shape index: {}]
  %s8 = sld [smem:[#allocation0]]
  $region73: #{tpu_custom_call.1} parent=0
    _
  %s10 = ssub.s32 1, %s8
  %s11 = scalar_select 0, %s10, %s8
  $region1: #{tpu_custom_call.1} parent=0
    #allocation2 [shape = 'u8[131072]{0}', space=vmem, size = 0x20000, scoped, tag = 'input window, operand 0']
    #allocation3 [shape = 's32[2]{0}', space=sflag, size = 0x8, scoped, tag = 'scoped memory for tpu_custom_call.1']
    #allocation4 [shape = 's32[2]{0}', space=sflag, size = 0x8, scoped, tag = 'scoped memory for tpu_custom_call.1']
    #allocation5 [shape = 'u8[131072]{0}', space=vmem, size = 0x20000, scoped, tag = 'input window, operand 3, single buffered']
    #allocation6 [shape = 's32[1]{0}', space=sflag, size = 0x4, scoped, tag = 'scoped memory for tpu_custom_call.1']
    #allocation7 [shape = 'u8[131072]{0}', space=vmem, size = 0x20000, scoped, tag = 'input window, operand 5, single buffered']
    #allocation8 [shape = 'u8[131072]{0}', space=vmem, size = 0x20000, scoped, tag = 'output window, operand 0']
    %12 = vsyncpa [#allocation3], 0
    %s13 = scalar_lea.sflag [#allocation3], 1
    %14 = vsyncpa %s13, 0
    %15 = vsyncpa [#allocation6], 0
    %16 = vsyncpa [#allocation4], 0
    %s17 = scalar_lea.sflag [#allocation4], 1
    %18 = vsyncpa %s17, 0
    loop: start=0, step=1, limit=6
    $region2: #{tpu_custom_call.1} parent=1 // loop_pre_header
      _
    $region3: #{tpu_custom_call.1} parent=1 // loop_header
      %s20 = sphi 0, %s24
      %p21 = scmp.ge.s32.totalorder %s20, 6
      %s30 = sphi 0, %s32
      %s33 = sphi 0, %s30
      %s34 = sphi 0, %s33
      %s50 = sphi 0, %s34
      %s54 = sphi 0, %s54
      %s56 = sphi 0, %s54
      %s57 = sphi 0, %s56
      %s71 = sphi 0, %s57
      %s75 = sphi 0, %s75
      %s77 = sphi 0, %s75
      %s78 = sphi 0, %s77
      %s92 = sphi 0, %s78
      %s96 = sphi 0, %s96
      %s98 = sphi 0, %s96
      %s99 = sphi 0, %s98
      %s113 = sphi 0, %s99
      %s117 = sphi 0, %s117
      %s119 = sphi 0, %s117
      %s120 = sphi 0, %s119
      %s134 = sphi 0, %s120
      %s138 = sphi 0, %s138
      %s140 = sphi 0, %s138
      %s141 = sphi 0, %s140
      %s155 = sphi 0, %s141
      %s159 = sphi 0, %s159
      %s161 = sphi 0, %s159
      %s162 = sphi 0, %s161
      %s176 = sphi 0, %s162
      %s182 = sphi 0, %s184
      %s185 = sphi 0, %s182
      %s186 = sphi 0, %s185
      %s202 = sphi 0, %s186
    $region4: #{tpu_custom_call.1} parent=1 // loop_header_branch
      %23 = sbr.rel (%p21) target = $region8
    $region5: #{tpu_custom_call.1} parent=1 // loop_body
      %s25 = ssub.s32 %s20, 1
      %s26 = ssub.s32 %s20, 2
      %s27 = sadd.s32 %s20, 1
      %s28 = ssub.s32 %s20, %s27
      %p29 = scmp.eq.s32.totalorder %s28, 0
      %s31 = sadd.s32 %s30, 1
      %s32 = scalar_select %p29, %s30, %s31
      %p35 = pneg %p29
      %p36 = scmp.eq.s32.totalorder %s20, 3
      %p37 = por %p35, %p36
      %p38 = scmp.ne.s32.totalorder %s30, %s33
      %p39 = scmp.eq.s32.totalorder %s20, 0
      %p40 = por %p38, %p39
      %p41 = scmp.ne.s32.totalorder %s30, %s33
      %p42 = scmp.eq.s32.totalorder %s25, 3
      %p43 = por %p41, %p42
      %p44 = scmp.ne.s32.totalorder %s33, %s34
      %p45 = scmp.eq.s32.totalorder %s25, 0
      %p46 = por %p44, %p45
      %p47 = scmp.ne.s32.totalorder %s33, %s34
      %p48 = scmp.eq.s32.totalorder %s26, 3
      %p49 = por %p47, %p48
      %p51 = scmp.ne.s32.totalorder %s34, %s50
      %p52 = scmp.eq.s32.totalorder %s26, 0
      %p53 = por %p51, %p52
      %s55 = sadd.s32 %s54, 1
      %p58 = scmp.eq.s32.totalorder %s20, 3
      %p59 = scmp.ne.s32.totalorder %s54, %s56
      %p60 = scmp.eq.s32.totalorder %s20, 0
      %p61 = por %p59, %p60
      %p62 = scmp.ne.s32.totalorder %s54, %s56
      %p63 = scmp.eq.s32.totalorder %s25, 3
      %p64 = por %p62, %p63
      %p65 = scmp.ne.s32.totalorder %s56, %s57
      %p66 = scmp.eq.s32.totalorder %s25, 0
      %p67 = por %p65, %p66
      %p68 = scmp.ne.s32.totalorder %s56, %s57
      %p69 = scmp.eq.s32.totalorder %s26, 3
      %p70 = por %p68, %p69
      %p72 = scmp.ne.s32.totalorder %s57, %s71
      %p73 = scmp.eq.s32.totalorder %s26, 0
      %p74 = por %p72, %p73
      %s76 = sadd.s32 %s75, 1
      %p79 = scmp.eq.s32.totalorder %s20, 3
      %p80 = scmp.ne.s32.totalorder %s75, %s77
      %p81 = scmp.eq.s32.totalorder %s20, 0
      %p82 = por %p80, %p81
      %p83 = scmp.ne.s32.totalorder %s75, %s77
      %p84 = scmp.eq.s32.totalorder %s25, 3
      %p85 = por %p83, %p84
      %p86 = scmp.ne.s32.totalorder %s77, %s78
      %p87 = scmp.eq.s32.totalorder %s25, 0
      %p88 = por %p86, %p87
      %p89 = scmp.ne.s32.totalorder %s77, %s78
      %p90 = scmp.eq.s32.totalorder %s26, 3
      %p91 = por %p89, %p90
      %p93 = scmp.ne.s32.totalorder %s78, %s92
      %p94 = scmp.eq.s32.totalorder %s26, 0
      %p95 = por %p93, %p94
      %s97 = sadd.s32 %s96, 1
      %p100 = scmp.eq.s32.totalorder %s20, 3
      %p101 = scmp.ne.s32.totalorder %s96, %s98
      %p102 = scmp.eq.s32.totalorder %s20, 0
      %p103 = por %p101, %p102
      %p104 = scmp.ne.s32.totalorder %s96, %s98
      %p105 = scmp.eq.s32.totalorder %s25, 3
      %p106 = por %p104, %p105
      %p107 = scmp.ne.s32.totalorder %s98, %s99
      %p108 = scmp.eq.s32.totalorder %s25, 0
      %p109 = por %p107, %p108
      %p110 = scmp.ne.s32.totalorder %s98, %s99
      %p111 = scmp.eq.s32.totalorder %s26, 3
      %p112 = por %p110, %p111
      %p114 = scmp.ne.s32.totalorder %s99, %s113
      %p115 = scmp.eq.s32.totalorder %s26, 0
      %p116 = por %p114, %p115
      %s118 = sadd.s32 %s117, 1
      %p121 = scmp.eq.s32.totalorder %s20, 3
      %p122 = scmp.ne.s32.totalorder %s117, %s119
      %p123 = scmp.eq.s32.totalorder %s20, 0
      %p124 = por %p122, %p123
      %p125 = scmp.ne.s32.totalorder %s117, %s119
      %p126 = scmp.eq.s32.totalorder %s25, 3
      %p127 = por %p125, %p126
      %p128 = scmp.ne.s32.totalorder %s119, %s120
      %p129 = scmp.eq.s32.totalorder %s25, 0
      %p130 = por %p128, %p129
      %p131 = scmp.ne.s32.totalorder %s119, %s120
      %p132 = scmp.eq.s32.totalorder %s26, 3
      %p133 = por %p131, %p132
      %p135 = scmp.ne.s32.totalorder %s120, %s134
      %p136 = scmp.eq.s32.totalorder %s26, 0
      %p137 = por %p135, %p136
      %s139 = sadd.s32 %s138, 1
      %p142 = scmp.eq.s32.totalorder %s20, 3
      %p143 = scmp.ne.s32.totalorder %s138, %s140
      %p144 = scmp.eq.s32.totalorder %s20, 0
      %p145 = por %p143, %p144
      %p146 = scmp.ne.s32.totalorder %s138, %s140
      %p147 = scmp.eq.s32.totalorder %s25, 3
      %p148 = por %p146, %p147
      %p149 = scmp.ne.s32.totalorder %s140, %s141
      %p150 = scmp.eq.s32.totalorder %s25, 0
      %p151 = por %p149, %p150
      %p152 = scmp.ne.s32.totalorder %s140, %s141
      %p153 = scmp.eq.s32.totalorder %s26, 3
      %p154 = por %p152, %p153
      %p156 = scmp.ne.s32.totalorder %s141, %s155
      %p157 = scmp.eq.s32.totalorder %s26, 0
      %p158 = por %p156, %p157
      %s160 = sadd.s32 %s159, 1
      %p163 = scmp.eq.s32.totalorder %s20, 3
      %p164 = scmp.ne.s32.totalorder %s159, %s161
      %p165 = scmp.eq.s32.totalorder %s20, 0
      %p166 = por %p164, %p165
      %p167 = scmp.ne.s32.totalorder %s159, %s161
      %p168 = scmp.eq.s32.totalorder %s25, 3
      %p169 = por %p167, %p168
      %p170 = scmp.ne.s32.totalorder %s161, %s162
      %p171 = scmp.eq.s32.totalorder %s25, 0
      %p172 = por %p170, %p171
      %p173 = scmp.ne.s32.totalorder %s161, %s162
      %p174 = scmp.eq.s32.totalorder %s26, 3
      %p175 = por %p173, %p174
      %p177 = scmp.ne.s32.totalorder %s162, %s176
      %p178 = scmp.eq.s32.totalorder %s26, 0
      %p179 = por %p177, %p178
      %s180 = ssub.s32 %s20, %s27
      %p181 = scmp.eq.s32.totalorder %s180, 0
      %s183 = sadd.s32 %s182, 1
      %s184 = scalar_select %p181, %s182, %s183
      %p187 = pneg %p181
      %p188 = scmp.eq.s32.totalorder %s20, 3
      %p189 = por %p187, %p188
      %p190 = scmp.ne.s32.totalorder %s182, %s185
      %p191 = scmp.eq.s32.totalorder %s20, 0
      %p192 = por %p190, %p191
      %p193 = scmp.ne.s32.totalorder %s182, %s185
      %p194 = scmp.eq.s32.totalorder %s25, 3
      %p195 = por %p193, %p194
      %p196 = scmp.ne.s32.totalorder %s185, %s186
      %p197 = scmp.eq.s32.totalorder %s25, 0
      %p198 = por %p196, %p197
      %p199 = scmp.ne.s32.totalorder %s185, %s186
      %p200 = scmp.eq.s32.totalorder %s26, 3
      %p201 = por %p199, %p200
      %p203 = scmp.ne.s32.totalorder %s186, %s202
      %p204 = scmp.eq.s32.totalorder %s26, 0
      %p205 = por %p203, %p204
      %p206 = scmp.le.s32.totalorder 1, %s20
      %p207 = scmp.lt.s32.totalorder %s20, 5
      %p208 = pnand %p206, %p207
      %p209 = pneg %p208
      // Predicated region
      $region9: #{tpu_custom_call.1} parent=5 // pred_check
        _
      $region10: #{tpu_custom_call.1} parent=5 // pred_check_branch
        %211 = sbr.rel (%p208) target = $region12
      $region11: #{tpu_custom_call.1} parent=5 // pred_region
        %s212 = ssub.s32 %s20, 1
        // Predicated region
        $region13: #{tpu_custom_call.1} parent=11 // pred_check
          %p213 = pneg %p67
        $region14: #{tpu_custom_call.1} parent=11 // pred_check_branch
          %215 = sbr.rel (%p213) target = $region16
        $region15: #{tpu_custom_call.1} parent=11 // pred_region
          _
        $region16: #{tpu_custom_call.1} parent=11 // pred_fallthru
          _
        // Predicated region
        $region17: #{tpu_custom_call.1} parent=11 // pred_check
          %p216 = pneg %p88
        $region18: #{tpu_custom_call.1} parent=11 // pred_check_branch
          %218 = sbr.rel (%p216) target = $region20
        $region19: #{tpu_custom_call.1} parent=11 // pred_region
          _
        $region20: #{tpu_custom_call.1} parent=11 // pred_fallthru
          _
        // Predicated region
        $region21: #{tpu_custom_call.1} parent=11 // pred_check
          %p219 = pneg %p109
        $region22: #{tpu_custom_call.1} parent=11 // pred_check_branch
          %221 = sbr.rel (%p219) target = $region24
        $region23: #{tpu_custom_call.1} parent=11 // pred_region
          %s223 = ssub.s32 4096, 4096
          %224 = vsyncadd [#allocation6], %s223
          %s225 = sshll.u32 [#allocation5], 4
          %s226 = int_to_ptr.vmem [resolvable:$true] %s225
          %231 = dma.hbm_to_vmem [thread:$0]  %s3, 4096, %s226, [#allocation6], 256, 256, 16
        $region24: #{tpu_custom_call.1} parent=11 // pred_fallthru
          _
        // Predicated region
        $region25: #{tpu_custom_call.1} parent=11 // pred_check
          %p232 = pneg %p130
        $region26: #{tpu_custom_call.1} parent=11 // pred_check_branch
          %234 = sbr.rel (%p232) target = $region28
        $region27: #{tpu_custom_call.1} parent=11 // pred_region
          _
        $region28: #{tpu_custom_call.1} parent=11 // pred_fallthru
          _
        // Predicated region
        $region29: #{tpu_custom_call.1} parent=11 // pred_check
          %p235 = pneg %p151
        $region30: #{tpu_custom_call.1} parent=11 // pred_check_branch
          %237 = sbr.rel (%p235) target = $region32
        $region31: #{tpu_custom_call.1} parent=11 // pred_region
          %s239 = ssub.s32 4096, 4096
          %240 = vsyncadd [#allocation6], %s239
          %s241 = sshll.u32 [#allocation7], 4
          %s242 = int_to_ptr.vmem [resolvable:$true] %s241
          %247 = dma.hbm_to_vmem [thread:$0]  %s5, 4096, %s242, [#allocation6], 64, 64, 4
        $region32: #{tpu_custom_call.1} parent=11 // pred_fallthru
          _
        // Predicated region
        $region33: #{tpu_custom_call.1} parent=11 // pred_check
          %p248 = pneg %p172
        $region34: #{tpu_custom_call.1} parent=11 // pred_check_branch
          %250 = sbr.rel (%p248) target = $region36
        $region35: #{tpu_custom_call.1} parent=11 // pred_region
          _
        $region36: #{tpu_custom_call.1} parent=11 // pred_fallthru
          _
      $region12: #{tpu_custom_call.1} parent=5 // pred_fallthru
        _
      %p251 = scmp.lt.s32.totalorder %s20, 4
      // Predicated region
      $region37: #{tpu_custom_call.1} parent=5 // pred_check
        %p252 = pneg %p251
      $region38: #{tpu_custom_call.1} parent=5 // pred_check_branch
        %254 = sbr.rel (%p252) target = $region40
      $region39: #{tpu_custom_call.1} parent=5 // pred_region
        // Predicated region
        $region41: #{tpu_custom_call.1} parent=39 // pred_check
          %p255 = pneg %p40
        $region42: #{tpu_custom_call.1} parent=39 // pred_check_branch
          %257 = sbr.rel (%p255) target = $region44
        $region43: #{tpu_custom_call.1} parent=39 // pred_region
          %s258 = sand.u32 %s30, 1
          %s259 = scalar_lea.sflag [#allocation3], %s258
          %s260 = sand.u32 %s30, 1
          %s261 = smul.addr %s260, 128
          %s262 = scalar_lea.vmem [#allocation2], %s261
          %s263 = smul.u32 16, %s20
          %s265 = ssub.s32 2048, 2048
          %266 = vsyncadd %s259, %s265
          %s267 = smul.addr %s263, 128
          %s268 = scalar_lea.hbm %s0, %s267
          %s269 = sshll.u32 %s262, 4
          %s270 = int_to_ptr.vmem [resolvable:$true] %s269
          %275 = dma.hbm_to_vmem [thread:$0]  %s268, 2048, %s270, %s259, 128, 128, 8
        $region44: #{tpu_custom_call.1} parent=39 // pred_fallthru
          _
      $region40: #{tpu_custom_call.1} parent=5 // pred_fallthru
        _
      %p276 = scmp.le.s32.totalorder 1, %s20
      %p277 = scmp.lt.s32.totalorder %s20, 5
      %p278 = pnand %p276, %p277
      %p279 = pneg %p278
      // Predicated region
      $region45: #{tpu_custom_call.1} parent=5 // pred_check
        _
      $region46: #{tpu_custom_call.1} parent=5 // pred_check_branch
        %281 = sbr.rel (%p278) target = $region48
      $region47: #{tpu_custom_call.1} parent=5 // pred_region
        %s282 = ssub.s32 %s20, 1
        %s283 = sand.u32 %s33, 1
        %s284 = scalar_lea.sflag [#allocation3], %s283
        %s285 = sand.u32 %s33, 1
        %s286 = smul.addr %s285, 128
        %s287 = scalar_lea.vmem [#allocation2], %s286
        // Predicated region
        $region49: #{tpu_custom_call.1} parent=47 // pred_check
          %p288 = pneg %p46
        $region50: #{tpu_custom_call.1} parent=47 // pred_check_branch
          %290 = sbr.rel (%p288) target = $region52
        $region51: #{tpu_custom_call.1} parent=47 // pred_region
          %291 = dma.done %s284, 2048
        $region52: #{tpu_custom_call.1} parent=47 // pred_fallthru
          _
        // Predicated region
        $region53: #{tpu_custom_call.1} parent=47 // pred_check
          %p292 = pneg %p109
        $region54: #{tpu_custom_call.1} parent=47 // pred_check_branch
          %294 = sbr.rel (%p292) target = $region56
        $region55: #{tpu_custom_call.1} parent=47 // pred_region
          %295 = dma.done [#allocation6], 4096
        $region56: #{tpu_custom_call.1} parent=47 // pred_fallthru
          _
        // Predicated region
        $region57: #{tpu_custom_call.1} parent=47 // pred_check
          %p296 = pneg %p151
        $region58: #{tpu_custom_call.1} parent=47 // pred_check_branch
          %298 = sbr.rel (%p296) target = $region60
        $region59: #{tpu_custom_call.1} parent=47 // pred_region
          %299 = dma.done [#allocation6], 4096
        $region60: #{tpu_custom_call.1} parent=47 // pred_fallthru
          _
        %s300 = sand.u32 %s33, 1
        %s301 = scalar_lea.sflag [#allocation3], %s300
        %s302 = sand.u32 %s33, 1
        %s303 = smul.addr %s302, 128
        %s304 = scalar_lea.vmem [#allocation2], %s303
        %p305 = pneg %p46
        %p306 = pneg %p43
        %p307 = pneg %p67
        %p308 = pneg %p64
        %p309 = pneg %p88
        %p310 = pneg %p85
        %p311 = pneg %p109
        %p312 = pneg %p106
        %p313 = pneg %p130
        %p314 = pneg %p127
        %p315 = pneg %p151
        %p316 = pneg %p148
        %p317 = pneg %p172
        %p318 = pneg %p169
        %p319 = pneg %p198
        %p320 = pneg %p195
        %s321 = sand.u32 %s185, 1
        %s322 = scalar_lea.sflag [#allocation4], %s321
        %s323 = sand.u32 %s185, 1
        %s324 = smul.addr %s323, 128
        %s325 = scalar_lea.vmem [#allocation8], %s324
        %s326 = smul.u32 16, %s25
        %s327 = smul.u32 16, %s25
        %v329 = vld [vmem:[%s287] sm:$0xff]
        %v330 = vld [vmem:[%s287 + $0x8] sm:$0xff]
        %v331 = vld [vmem:[%s287 + $0x10] sm:$0xff]
        %v332 = vld [vmem:[%s287 + $0x18] sm:$0xff]
        %v333 = vld [vmem:[%s287 + $0x20] sm:$0xff]
        %v334 = vld [vmem:[%s287 + $0x28] sm:$0xff]
        %v335 = vld [vmem:[%s287 + $0x30] sm:$0xff]
        %v336 = vld [vmem:[%s287 + $0x38] sm:$0xff]
        %v337 = vld [vmem:[%s287 + $0x40] sm:$0xff]
        %v338 = vld [vmem:[%s287 + $0x48] sm:$0xff]
        %v339 = vld [vmem:[%s287 + $0x50] sm:$0xff]
        %v340 = vld [vmem:[%s287 + $0x58] sm:$0xff]
        %v341 = vld [vmem:[%s287 + $0x60] sm:$0xff]
        %v342 = vld [vmem:[%s287 + $0x68] sm:$0xff]
        %v343 = vld [vmem:[%s287 + $0x70] sm:$0xff]
        %v344 = vld [vmem:[%s287 + $0x78] sm:$0xff]
        %345 = vadd.xlane.f32.xlu0 %v329
        %v346 = vpop.xlane.xlu0 %345
        %347 = vadd.xlane.f32.xlu0 %v330
        %v348 = vpop.xlane.xlu0 %347
        %349 = vadd.xlane.f32.xlu0 %v331
        %v350 = vpop.xlane.xlu0 %349
        %351 = vadd.xlane.f32.xlu0 %v332
        %v352 = vpop.xlane.xlu0 %351
        %353 = vadd.xlane.f32.xlu0 %v333
        %v354 = vpop.xlane.xlu0 %353
        %355 = vadd.xlane.f32.xlu0 %v334
        %v356 = vpop.xlane.xlu0 %355
        %357 = vadd.xlane.f32.xlu0 %v335
        %v358 = vpop.xlane.xlu0 %357
        %359 = vadd.xlane.f32.xlu0 %v336
        %v360 = vpop.xlane.xlu0 %359
        %361 = vadd.xlane.f32.xlu0 %v337
        %v362 = vpop.xlane.xlu0 %361
        %363 = vadd.xlane.f32.xlu0 %v338
        %v364 = vpop.xlane.xlu0 %363
        %365 = vadd.xlane.f32.xlu0 %v339
        %v366 = vpop.xlane.xlu0 %365
        %367 = vadd.xlane.f32.xlu0 %v340
        %v368 = vpop.xlane.xlu0 %367
        %369 = vadd.xlane.f32.xlu0 %v341
        %v370 = vpop.xlane.xlu0 %369
        %371 = vadd.xlane.f32.xlu0 %v342
        %v372 = vpop.xlane.xlu0 %371
        %373 = vadd.xlane.f32.xlu0 %v343
        %v374 = vpop.xlane.xlu0 %373
        %375 = vadd.xlane.f32.xlu0 %v344
        %v376 = vpop.xlane.xlu0 %375
        %v377 = vrcp.pop 128.0
        %v378 = vmul.f32 %v346, %v377
        %v379 = vmul.f32 %v348, %v377
        %v380 = vmul.f32 %v350, %v377
        %v381 = vmul.f32 %v352, %v377
        %v382 = vmul.f32 %v354, %v377
        %v383 = vmul.f32 %v356, %v377
        %v384 = vmul.f32 %v358, %v377
        %v385 = vmul.f32 %v360, %v377
        %v386 = vmul.f32 %v362, %v377
        %v387 = vmul.f32 %v364, %v377
        %v388 = vmul.f32 %v366, %v377
        %v389 = vmul.f32 %v368, %v377
        %v390 = vmul.f32 %v370, %v377
        %v391 = vmul.f32 %v372, %v377
        %v392 = vmul.f32 %v374, %v377
        %v393 = vmul.f32 %v376, %v377
        %v394 = vsub.f32 %v329, %v378
        %v395 = vsub.f32 %v330, %v379
        %v396 = vsub.f32 %v331, %v380
        %v397 = vsub.f32 %v332, %v381
        %v398 = vsub.f32 %v333, %v382
        %v399 = vsub.f32 %v334, %v383
        %v400 = vsub.f32 %v335, %v384
        %v401 = vsub.f32 %v336, %v385
        %v402 = vsub.f32 %v337, %v386
        %v403 = vsub.f32 %v338, %v387
        %v404 = vsub.f32 %v339, %v388
        %v405 = vsub.f32 %v340, %v389
        %v406 = vsub.f32 %v341, %v390
        %v407 = vsub.f32 %v342, %v391
        %v408 = vsub.f32 %v343, %v392
        %v409 = vsub.f32 %v344, %v393
        %v410 = vmul.f32 %v394, %v394
        %v411 = vmul.f32 %v395, %v395
        %v412 = vmul.f32 %v396, %v396
        %v413 = vmul.f32 %v397, %v397
        %v414 = vmul.f32 %v398, %v398
        %v415 = vmul.f32 %v399, %v399
        %v416 = vmul.f32 %v400, %v400
        %v417 = vmul.f32 %v401, %v401
        %v418 = vmul.f32 %v402, %v402
        %v419 = vmul.f32 %v403, %v403
        %v420 = vmul.f32 %v404, %v404
        %v421 = vmul.f32 %v405, %v405
        %v422 = vmul.f32 %v406, %v406
        %v423 = vmul.f32 %v407, %v407
        %v424 = vmul.f32 %v408, %v408
        %v425 = vmul.f32 %v409, %v409
        %426 = vadd.xlane.f32.xlu0 %v410
        %v427 = vpop.xlane.xlu0 %426
        %428 = vadd.xlane.f32.xlu0 %v411
        %v429 = vpop.xlane.xlu0 %428
        %430 = vadd.xlane.f32.xlu0 %v412
        %v431 = vpop.xlane.xlu0 %430
        %432 = vadd.xlane.f32.xlu0 %v413
        %v433 = vpop.xlane.xlu0 %432
        %434 = vadd.xlane.f32.xlu0 %v414
        %v435 = vpop.xlane.xlu0 %434
        %436 = vadd.xlane.f32.xlu0 %v415
        %v437 = vpop.xlane.xlu0 %436
        %438 = vadd.xlane.f32.xlu0 %v416
        %v439 = vpop.xlane.xlu0 %438
        %440 = vadd.xlane.f32.xlu0 %v417
        %v441 = vpop.xlane.xlu0 %440
        %442 = vadd.xlane.f32.xlu0 %v418
        %v443 = vpop.xlane.xlu0 %442
        %444 = vadd.xlane.f32.xlu0 %v419
        %v445 = vpop.xlane.xlu0 %444
        %446 = vadd.xlane.f32.xlu0 %v420
        %v447 = vpop.xlane.xlu0 %446
        %448 = vadd.xlane.f32.xlu0 %v421
        %v449 = vpop.xlane.xlu0 %448
        %450 = vadd.xlane.f32.xlu0 %v422
        %v451 = vpop.xlane.xlu0 %450
        %452 = vadd.xlane.f32.xlu0 %v423
        %v453 = vpop.xlane.xlu0 %452
        %454 = vadd.xlane.f32.xlu0 %v424
        %v455 = vpop.xlane.xlu0 %454
        %456 = vadd.xlane.f32.xlu0 %v425
        %v457 = vpop.xlane.xlu0 %456
        %v458 = vmul.f32 %v427, %v377
        %v459 = vmul.f32 %v429, %v377
        %v460 = vmul.f32 %v431, %v377
        %v461 = vmul.f32 %v433, %v377
        %v462 = vmul.f32 %v435, %v377
        %v463 = vmul.f32 %v437, %v377
        %v464 = vmul.f32 %v439, %v377
        %v465 = vmul.f32 %v441, %v377
        %v466 = vmul.f32 %v443, %v377
        %v467 = vmul.f32 %v445, %v377
        %v468 = vmul.f32 %v447, %v377
        %v469 = vmul.f32 %v449, %v377
        %v470 = vmul.f32 %v451, %v377
        %v471 = vmul.f32 %v453, %v377
        %v472 = vmul.f32 %v455, %v377
        %v473 = vmul.f32 %v457, %v377
        %v474 = vadd.f32 %v458, 1e-05
        %v475 = vadd.f32 %v459, 1e-05
        %v476 = vadd.f32 %v460, 1e-05
        %v477 = vadd.f32 %v461, 1e-05
        %v478 = vadd.f32 %v462, 1e-05
        %v479 = vadd.f32 %v463, 1e-05
        %v480 = vadd.f32 %v464, 1e-05
        %v481 = vadd.f32 %v465, 1e-05
        %v482 = vadd.f32 %v466, 1e-05
        %v483 = vadd.f32 %v467, 1e-05
        %v484 = vadd.f32 %v468, 1e-05
        %v485 = vadd.f32 %v469, 1e-05
        %v486 = vadd.f32 %v470, 1e-05
        %v487 = vadd.f32 %v471, 1e-05
        %v488 = vadd.f32 %v472, 1e-05
        %v489 = vadd.f32 %v473, 1e-05
        %v490 = vrsqrt.pop %v474
        %v491 = vrsqrt.pop %v475
        %v492 = vrsqrt.pop %v476
        %v493 = vrsqrt.pop %v477
        %v494 = vrsqrt.pop %v478
        %v495 = vrsqrt.pop %v479
        %v496 = vrsqrt.pop %v480
        %v497 = vrsqrt.pop %v481
        %v498 = vrsqrt.pop %v482
        %v499 = vrsqrt.pop %v483
        %v500 = vrsqrt.pop %v484
        %v501 = vrsqrt.pop %v485
        %v502 = vrsqrt.pop %v486
        %v503 = vrsqrt.pop %v487
        %v504 = vrsqrt.pop %v488
        %v505 = vrsqrt.pop %v489
        %v506 = vmul.f32 %v394, %v490
        %v507 = vmul.f32 %v395, %v491
        %v508 = vmul.f32 %v396, %v492
        %v509 = vmul.f32 %v397, %v493
        %v510 = vmul.f32 %v398, %v494
        %v511 = vmul.f32 %v399, %v495
        %v512 = vmul.f32 %v400, %v496
        %v513 = vmul.f32 %v401, %v497
        %v514 = vmul.f32 %v402, %v498
        %v515 = vmul.f32 %v403, %v499
        %v516 = vmul.f32 %v404, %v500
        %v517 = vmul.f32 %v405, %v501
        %v518 = vmul.f32 %v406, %v502
        %v519 = vmul.f32 %v407, %v503
        %v520 = vmul.f32 %v408, %v504
        %v521 = vmul.f32 %v409, %v505
        %v522 = vld [vmem:[%s1] sm:$0x1]
        %v524 = vlaneseq
        %v525 = vshrl.u32 %v524, 7
        %v526 = vsub.s32 0, %v525
        %v527 = vrot.slane %v522, %v526
        %v529 = vmul.f32 %v506, %v527
        %v530 = vmul.f32 %v507, %v527
        %v531 = vmul.f32 %v508, %v527
        %v532 = vmul.f32 %v509, %v527
        %v533 = vmul.f32 %v510, %v527
        %v534 = vmul.f32 %v511, %v527
        %v535 = vmul.f32 %v512, %v527
        %v536 = vmul.f32 %v513, %v527
        %v537 = vmul.f32 %v514, %v527
        %v538 = vmul.f32 %v515, %v527
        %v539 = vmul.f32 %v516, %v527
        %v540 = vmul.f32 %v517, %v527
        %v541 = vmul.f32 %v518, %v527
        %v542 = vmul.f32 %v519, %v527
        %v543 = vmul.f32 %v520, %v527
        %v544 = vmul.f32 %v521, %v527
        %v545 = vld [vmem:[%s2] sm:$0x1]
        %v547 = vlaneseq
        %v548 = vshrl.u32 %v547, 7
        %v549 = vsub.s32 0, %v548
        %v550 = vrot.slane %v545, %v549
        %v552 = vadd.f32 %v529, %v550
        %v553 = vadd.f32 %v530, %v550
        %v554 = vadd.f32 %v531, %v550
        %v555 = vadd.f32 %v532, %v550
        %v556 = vadd.f32 %v533, %v550
        %v557 = vadd.f32 %v534, %v550
        %v558 = vadd.f32 %v535, %v550
        %v559 = vadd.f32 %v536, %v550
        %v560 = vadd.f32 %v537, %v550
        %v561 = vadd.f32 %v538, %v550
        %v562 = vadd.f32 %v539, %v550
        %v563 = vadd.f32 %v540, %v550
        %v564 = vadd.f32 %v541, %v550
        %v565 = vadd.f32 %v542, %v550
        %v566 = vadd.f32 %v543, %v550
        %v567 = vadd.f32 %v544, %v550
        %v568 = vpack.c.bf16 %v553, %v552
        %v569 = vpack.c.bf16 %v555, %v554
        %v570 = vpack.c.bf16 %v557, %v556
        %v571 = vpack.c.bf16 %v559, %v558
        %v572 = vpack.c.bf16 %v561, %v560
        %v573 = vpack.c.bf16 %v563, %v562
        %v574 = vpack.c.bf16 %v565, %v564
        %v575 = vpack.c.bf16 %v567, %v566
        %v576 = vld [vmem:[#allocation5] sm:$0xff]
        %v577 = vld [vmem:[#allocation5 + $0x8] sm:$0xff]
        %v578 = vld [vmem:[#allocation5 + $0x10] sm:$0xff]
        %v579 = vld [vmem:[#allocation5 + $0x18] sm:$0xff]
        %v580 = vld [vmem:[#allocation5 + $0x20] sm:$0xff]
        %v581 = vld [vmem:[#allocation5 + $0x28] sm:$0xff]
        %v582 = vld [vmem:[#allocation5 + $0x30] sm:$0xff]
        %v583 = vld [vmem:[#allocation5 + $0x38] sm:$0xff]
        %v584 = vld [vmem:[#allocation5 + $0x40] sm:$0xff]
        %v585 = vld [vmem:[#allocation5 + $0x48] sm:$0xff]
        %v586 = vld [vmem:[#allocation5 + $0x50] sm:$0xff]
        %v587 = vld [vmem:[#allocation5 + $0x58] sm:$0xff]
        %v588 = vld [vmem:[#allocation5 + $0x60] sm:$0xff]
        %v589 = vld [vmem:[#allocation5 + $0x68] sm:$0xff]
        %v590 = vld [vmem:[#allocation5 + $0x70] sm:$0xff]
        %v591 = vld [vmem:[#allocation5 + $0x78] sm:$0xff]
        %v592 = vld [vmem:[#allocation5 + $0x80] sm:$0xff]
        %v593 = vld [vmem:[#allocation5 + $0x88] sm:$0xff]
        %v594 = vld [vmem:[#allocation5 + $0x90] sm:$0xff]
        %v595 = vld [vmem:[#allocation5 + $0x98] sm:$0xff]
        %v596 = vld [vmem:[#allocation5 + $0xa0] sm:$0xff]
        %v597 = vld [vmem:[#allocation5 + $0xa8] sm:$0xff]
        %v598 = vld [vmem:[#allocation5 + $0xb0] sm:$0xff]
        %v599 = vld [vmem:[#allocation5 + $0xb8] sm:$0xff]
        %v600 = vld [vmem:[#allocation5 + $0xc0] sm:$0xff]
        %v601 = vld [vmem:[#allocation5 + $0xc8] sm:$0xff]
        %v602 = vld [vmem:[#allocation5 + $0xd0] sm:$0xff]
        %v603 = vld [vmem:[#allocation5 + $0xd8] sm:$0xff]
        %v604 = vld [vmem:[#allocation5 + $0xe0] sm:$0xff]
        %v605 = vld [vmem:[#allocation5 + $0xe8] sm:$0xff]
        %v606 = vld [vmem:[#allocation5 + $0xf0] sm:$0xff]
        %v607 = vld [vmem:[#allocation5 + $0xf8] sm:$0xff]
        %v608 = vld [vmem:[%s4] sm:$0xf]
        %v610 = vlaneseq
        %v611 = vshrl.u32 %v610, 7
        %v612 = vsub.s32 0, %v611
        %v613 = vrot.slane %v608, %v612
        %v614 = vlaneseq
        %v615 = vshrl.u32 %v614, 7
        %v616 = vsub.s32 1, %v615
        %v617 = vrot.slane %v608, %v616
        %v618 = vlaneseq
        %v619 = vshrl.u32 %v618, 7
        %v620 = vsub.s32 2, %v619
        %v621 = vrot.slane %v608, %v620
        %v622 = vlaneseq
        %v623 = vshrl.u32 %v622, 7
        %v624 = vsub.s32 3, %v623
        %v625 = vrot.slane %v608, %v624
        %v662 = vunpack.c.l.b16 %v576
        %v663 = vunpack.c.h.b16 %v576
        %v664 = vunpack.c.l.b16 %v577
        %v665 = vunpack.c.h.b16 %v577
        %v666 = vunpack.c.l.b16 %v578
        %v667 = vunpack.c.h.b16 %v578
        %v668 = vunpack.c.l.b16 %v579
        %v669 = vunpack.c.h.b16 %v579
        %v670 = vunpack.c.l.b16 %v580
        %v671 = vunpack.c.h.b16 %v580
        %v672 = vunpack.c.l.b16 %v581
        %v673 = vunpack.c.h.b16 %v581
        %v674 = vunpack.c.l.b16 %v582
        %v675 = vunpack.c.h.b16 %v582
        %v676 = vunpack.c.l.b16 %v583
        %v677 = vunpack.c.h.b16 %v583
        %v678 = vunpack.c.l.b16 %v584
        %v679 = vunpack.c.h.b16 %v584
        %v680 = vunpack.c.l.b16 %v585
        %v681 = vunpack.c.h.b16 %v585
        %v682 = vunpack.c.l.b16 %v586
        %v683 = vunpack.c.h.b16 %v586
        %v684 = vunpack.c.l.b16 %v587
        %v685 = vunpack.c.h.b16 %v587
        %v686 = vunpack.c.l.b16 %v588
        %v687 = vunpack.c.h.b16 %v588
        %v688 = vunpack.c.l.b16 %v589
        %v689 = vunpack.c.h.b16 %v589
        %v690 = vunpack.c.l.b16 %v590
        %v691 = vunpack.c.h.b16 %v590
        %v692 = vunpack.c.l.b16 %v591
        %v693 = vunpack.c.h.b16 %v591
        %v694 = vunpack.c.l.b16 %v592
        %v695 = vunpack.c.h.b16 %v592
        %v696 = vunpack.c.l.b16 %v593
        %v697 = vunpack.c.h.b16 %v593
        %v698 = vunpack.c.l.b16 %v594
        %v699 = vunpack.c.h.b16 %v594
        %v700 = vunpack.c.l.b16 %v595
        %v701 = vunpack.c.h.b16 %v595
        %v702 = vunpack.c.l.b16 %v596
        %v703 = vunpack.c.h.b16 %v596
        %v704 = vunpack.c.l.b16 %v597
        %v705 = vunpack.c.h.b16 %v597
        %v706 = vunpack.c.l.b16 %v598
        %v707 = vunpack.c.h.b16 %v598
        %v708 = vunpack.c.l.b16 %v599
        %v709 = vunpack.c.h.b16 %v599
        %v710 = vunpack.c.l.b16 %v600
        %v711 = vunpack.c.h.b16 %v600
        %v712 = vunpack.c.l.b16 %v601
        %v713 = vunpack.c.h.b16 %v601
        %v714 = vunpack.c.l.b16 %v602
        %v715 = vunpack.c.h.b16 %v602
        %v716 = vunpack.c.l.b16 %v603
        %v717 = vunpack.c.h.b16 %v603
        %v718 = vunpack.c.l.b16 %v604
        %v719 = vunpack.c.h.b16 %v604
        %v720 = vunpack.c.l.b16 %v605
        %v721 = vunpack.c.h.b16 %v605
        %v722 = vunpack.c.l.b16 %v606
        %v723 = vunpack.c.h.b16 %v606
        %v724 = vunpack.c.l.b16 %v607
        %v725 = vunpack.c.h.b16 %v607
        %v726 = vpack.c.b16 %v666, %v662
        %v727 = vpack.c.b16 %v667, %v663
        %v728 = vpack.c.b16 %v668, %v664
        %v729 = vpack.c.b16 %v669, %v665
        %v730 = vpack.c.b16 %v674, %v670
        %v731 = vpack.c.b16 %v675, %v671
        %v732 = vpack.c.b16 %v676, %v672
        %v733 = vpack.c.b16 %v677, %v673
        %v734 = vpack.c.b16 %v682, %v678
        %v735 = vpack.c.b16 %v683, %v679
        %v736 = vpack.c.b16 %v684, %v680
        %v737 = vpack.c.b16 %v685, %v681
        %v738 = vpack.c.b16 %v690, %v686
        %v739 = vpack.c.b16 %v691, %v687
        %v740 = vpack.c.b16 %v692, %v688
        %v741 = vpack.c.b16 %v693, %v689
        %v742 = vpack.c.b16 %v698, %v694
        %v743 = vpack.c.b16 %v699, %v695
        %v744 = vpack.c.b16 %v700, %v696
        %v745 = vpack.c.b16 %v701, %v697
        %v746 = vpack.c.b16 %v706, %v702
        %v747 = vpack.c.b16 %v707, %v703
        %v748 = vpack.c.b16 %v708, %v704
        %v749 = vpack.c.b16 %v709, %v705
        %v750 = vpack.c.b16 %v714, %v710
        %v751 = vpack.c.b16 %v715, %v711
        %v752 = vpack.c.b16 %v716, %v712
        %v753 = vpack.c.b16 %v717, %v713
        %v754 = vpack.c.b16 %v722, %v718
        %v755 = vpack.c.b16 %v723, %v719
        %v756 = vpack.c.b16 %v724, %v720
        %v757 = vpack.c.b16 %v725, %v721
        %790 = vmatprep.subr.bf16.mxu0 %v727
        %791 = vmatpush1.bf16.msra.mxu0 %v726
        %792 = vmatprep.subr.bf16.mxu0 %v731
        %793 = vmatpush1.bf16.msra.mxu0 %v730
        %794 = vmatprep.subr.bf16.mxu0 %v735
        %795 = vmatpush1.bf16.msra.mxu0 %v734
        %796 = vmatprep.subr.bf16.mxu0 %v739
        %797 = vmatpush1.bf16.msra.mxu0 %v738
        %798 = vmatprep.subr.bf16.mxu0 %v743
        %799 = vmatpush1.bf16.msra.mxu0 %v742
        %800 = vmatprep.subr.bf16.mxu0 %v747
        %801 = vmatpush1.bf16.msra.mxu0 %v746
        %802 = vmatprep.subr.bf16.mxu0 %v751
        %803 = vmatpush1.bf16.msra.mxu0 %v750
        %804 = vmatprep.subr.bf16.mxu0 %v755
        %805 = vmatpush1.bf16.msra.mxu0 %v754
        %806 = vmatprep.subr.bf16.mxu0 0
        %807 = vmatpush1.bf16.msra.mxu0 0
        %808 = vmatprep.subr.bf16.mxu0 0
        %809 = vmatpush1.bf16.msra.mxu0 0
        %810 = vmatprep.subr.bf16.mxu0 0
        %811 = vmatpush1.bf16.msra.mxu0 0
        %812 = vmatprep.subr.bf16.mxu0 0
        %813 = vmatpush1.bf16.msra.mxu0 0
        %814 = vmatprep.subr.bf16.mxu0 0
        %815 = vmatpush1.bf16.msra.mxu0 0
        %816 = vmatprep.subr.bf16.mxu0 0
        %817 = vmatpush1.bf16.msra.mxu0 0
        %818 = vmatprep.subr.bf16.mxu0 0
        %819 = vmatpush1.bf16.msra.mxu0 0
        %820 = vmatprep.subr.bf16.mxu0 0
        %821 = vmatpush1.bf16.msra.mxu0 0
        %822 = vmatprep.mubr.bf16.mxu0 0
        %823 = vmatmul.mubr.bf16.gmra.mrb[0].mxu0 %v568
        %v824 = vpop.f32.mrb[0].mxu0
        %v825 = vadd.f32 %v613, %v824
        %v826 = vpop.f32.mrb[0].mxu0
        %v827 = vadd.f32 %v617, %v826
        %v828 = vpop.f32.mrb[0].mxu0
        %v829 = vadd.f32 %v613, %v828
        %v830 = vpop.f32.mrb[0].mxu0
        %v831 = vadd.f32 %v617, %v830
        %832 = vmatprep.mubr.bf16.mxu0 0
        %833 = vmatmul.mubr.bf16.gmra.mrb[0].mxu0 %v569
        %v834 = vpop.f32.mrb[0].mxu0
        %v835 = vadd.f32 %v613, %v834
        %v836 = vpop.f32.mrb[0].mxu0
        %v837 = vadd.f32 %v617, %v836
        %v838 = vpop.f32.mrb[0].mxu0
        %v839 = vadd.f32 %v613, %v838
        %v840 = vpop.f32.mrb[0].mxu0
        %v841 = vadd.f32 %v617, %v840
        %842 = vmatprep.mubr.bf16.mxu0 0
        %843 = vmatmul.mubr.bf16.gmra.mrb[0].mxu0 %v570
        %v844 = vpop.f32.mrb[0].mxu0
        %v845 = vadd.f32 %v613, %v844
        %v846 = vpop.f32.mrb[0].mxu0
        %v847 = vadd.f32 %v617, %v846
        %v848 = vpop.f32.mrb[0].mxu0
        %v849 = vadd.f32 %v613, %v848
        %v850 = vpop.f32.mrb[0].mxu0
        %v851 = vadd.f32 %v617, %v850
        %852 = vmatprep.mubr.bf16.mxu0 0
        %853 = vmatmul.mubr.bf16.gmra.mrb[0].mxu0 %v571
        %v854 = vpop.f32.mrb[0].mxu0
        %v855 = vadd.f32 %v613, %v854
        %v856 = vpop.f32.mrb[0].mxu0
        %v857 = vadd.f32 %v617, %v856
        %v858 = vpop.f32.mrb[0].mxu0
        %v859 = vadd.f32 %v613, %v858
        %v860 = vpop.f32.mrb[0].mxu0
        %v861 = vadd.f32 %v617, %v860
        %862 = vmatprep.mubr.bf16.mxu0 0
        %863 = vmatmul.mubr.bf16.gmra.mrb[0].mxu0 %v572
        %v864 = vpop.f32.mrb[0].mxu0
        %v865 = vadd.f32 %v613, %v864
        %v866 = vpop.f32.mrb[0].mxu0
        %v867 = vadd.f32 %v617, %v866
        %v868 = vpop.f32.mrb[0].mxu0
        %v869 = vadd.f32 %v613, %v868
        %v870 = vpop.f32.mrb[0].mxu0
        %v871 = vadd.f32 %v617, %v870
        %872 = vmatprep.mubr.bf16.mxu0 0
        %873 = vmatmul.mubr.bf16.gmra.mrb[0].mxu0 %v573
        %v874 = vpop.f32.mrb[0].mxu0
        %v875 = vadd.f32 %v613, %v874
        %v876 = vpop.f32.mrb[0].mxu0
        %v877 = vadd.f32 %v617, %v876
        %v878 = vpop.f32.mrb[0].mxu0
        %v879 = vadd.f32 %v613, %v878
        %v880 = vpop.f32.mrb[0].mxu0
        %v881 = vadd.f32 %v617, %v880
        %882 = vmatprep.mubr.bf16.mxu0 0
        %883 = vmatmul.mubr.bf16.gmra.mrb[0].mxu0 %v574
        %v884 = vpop.f32.mrb[0].mxu0
        %v885 = vadd.f32 %v613, %v884
        %v886 = vpop.f32.mrb[0].mxu0
        %v887 = vadd.f32 %v617, %v886
        %v888 = vpop.f32.mrb[0].mxu0
        %v889 = vadd.f32 %v613, %v888
        %v890 = vpop.f32.mrb[0].mxu0
        %v891 = vadd.f32 %v617, %v890
        %892 = vmatprep.mubr.bf16.mxu0 0
        %893 = vmatmul.mubr.bf16.gmra.mrb[0].mxu0 %v575
        %v894 = vpop.f32.mrb[0].mxu0
        %v895 = vadd.f32 %v613, %v894
        %v896 = vpop.f32.mrb[0].mxu0
        %v897 = vadd.f32 %v617, %v896
        %v898 = vpop.f32.mrb[0].mxu0
        %v899 = vadd.f32 %v613, %v898
        %v900 = vpop.f32.mrb[0].mxu0
        %v901 = vadd.f32 %v617, %v900
        %902 = vdwg.mxu0
        %903 = vmatprep.subr.bf16.mxu0 %v729
        %904 = vmatpush1.bf16.msra.mxu0 %v728
        %905 = vmatprep.subr.bf16.mxu0 %v733
        %906 = vmatpush1.bf16.msra.mxu0 %v732
        %907 = vmatprep.subr.bf16.mxu0 %v737
        %908 = vmatpush1.bf16.msra.mxu0 %v736
        %909 = vmatprep.subr.bf16.mxu0 %v741
        %910 = vmatpush1.bf16.msra.mxu0 %v740
        %911 = vmatprep.subr.bf16.mxu0 %v745
        %912 = vmatpush1.bf16.msra.mxu0 %v744
        %913 = vmatprep.subr.bf16.mxu0 %v749
        %914 = vmatpush1.bf16.msra.mxu0 %v748
        %915 = vmatprep.subr.bf16.mxu0 %v753
        %916 = vmatpush1.bf16.msra.mxu0 %v752
        %917 = vmatprep.subr.bf16.mxu0 %v757
        %918 = vmatpush1.bf16.msra.mxu0 %v756
        %919 = vmatprep.subr.bf16.mxu0 0
        %920 = vmatpush1.bf16.msra.mxu0 0
        %921 = vmatprep.subr.bf16.mxu0 0
        %922 = vmatpush1.bf16.msra.mxu0 0
        %923 = vmatprep.subr.bf16.mxu0 0
        %924 = vmatpush1.bf16.msra.mxu0 0
        %925 = vmatprep.subr.bf16.mxu0 0
        %926 = vmatpush1.bf16.msra.mxu0 0
        %927 = vmatprep.subr.bf16.mxu0 0
        %928 = vmatpush1.bf16.msra.mxu0 0
        %929 = vmatprep.subr.bf16.mxu0 0
        %930 = vmatpush1.bf16.msra.mxu0 0
        %931 = vmatprep.subr.bf16.mxu0 0
        %932 = vmatpush1.bf16.msra.mxu0 0
        %933 = vmatprep.subr.bf16.mxu0 0
        %934 = vmatpush1.bf16.msra.mxu0 0
        %935 = vmatprep.mubr.bf16.mxu0 0
        %936 = vmatmul.mubr.bf16.gmra.mrb[0].mxu0 %v568
        %v937 = vpop.f32.mrb[0].mxu0
        %v938 = vadd.f32 %v621, %v937
        %v939 = vpop.f32.mrb[0].mxu0
        %v940 = vadd.f32 %v625, %v939
        %v941 = vpop.f32.mrb[0].mxu0
        %v942 = vadd.f32 %v621, %v941
        %v943 = vpop.f32.mrb[0].mxu0
        %v944 = vadd.f32 %v625, %v943
        %945 = vmatprep.mubr.bf16.mxu0 0
        %946 = vmatmul.mubr.bf16.gmra.mrb[0].mxu0 %v569
        %v947 = vpop.f32.mrb[0].mxu0
        %v948 = vadd.f32 %v621, %v947
        %v949 = vpop.f32.mrb[0].mxu0
        %v950 = vadd.f32 %v625, %v949
        %v951 = vpop.f32.mrb[0].mxu0
        %v952 = vadd.f32 %v621, %v951
        %v953 = vpop.f32.mrb[0].mxu0
        %v954 = vadd.f32 %v625, %v953
        %955 = vmatprep.mubr.bf16.mxu0 0
        %956 = vmatmul.mubr.bf16.gmra.mrb[0].mxu0 %v570
        %v957 = vpop.f32.mrb[0].mxu0
        %v958 = vadd.f32 %v621, %v957
        %v959 = vpop.f32.mrb[0].mxu0
        %v960 = vadd.f32 %v625, %v959
        %v961 = vpop.f32.mrb[0].mxu0
        %v962 = vadd.f32 %v621, %v961
        %v963 = vpop.f32.mrb[0].mxu0
        %v964 = vadd.f32 %v625, %v963
        %965 = vmatprep.mubr.bf16.mxu0 0
        %966 = vmatmul.mubr.bf16.gmra.mrb[0].mxu0 %v571
        %v967 = vpop.f32.mrb[0].mxu0
        %v968 = vadd.f32 %v621, %v967
        %v969 = vpop.f32.mrb[0].mxu0
        %v970 = vadd.f32 %v625, %v969
        %v971 = vpop.f32.mrb[0].mxu0
        %v972 = vadd.f32 %v621, %v971
        %v973 = vpop.f32.mrb[0].mxu0
        %v974 = vadd.f32 %v625, %v973
        %975 = vmatprep.mubr.bf16.mxu0 0
        %976 = vmatmul.mubr.bf16.gmra.mrb[0].mxu0 %v572
        %v977 = vpop.f32.mrb[0].mxu0
        %v978 = vadd.f32 %v621, %v977
        %v979 = vpop.f32.mrb[0].mxu0
        %v980 = vadd.f32 %v625, %v979
        %v981 = vpop.f32.mrb[0].mxu0
        %v982 = vadd.f32 %v621, %v981
        %v983 = vpop.f32.mrb[0].mxu0
        %v984 = vadd.f32 %v625, %v983
        %985 = vmatprep.mubr.bf16.mxu0 0
        %986 = vmatmul.mubr.bf16.gmra.mrb[0].mxu0 %v573
        %v987 = vpop.f32.mrb[0].mxu0
        %v988 = vadd.f32 %v621, %v987
        %v989 = vpop.f32.mrb[0].mxu0
        %v990 = vadd.f32 %v625, %v989
        %v991 = vpop.f32.mrb[0].mxu0
        %v992 = vadd.f32 %v621, %v991
        %v993 = vpop.f32.mrb[0].mxu0
        %v994 = vadd.f32 %v625, %v993
        %995 = vmatprep.mubr.bf16.mxu0 0
        %996 = vmatmul.mubr.bf16.gmra.mrb[0].mxu0 %v574
        %v997 = vpop.f32.mrb[0].mxu0
        %v998 = vadd.f32 %v621, %v997
        %v999 = vpop.f32.mrb[0].mxu0
        %v1000 = vadd.f32 %v625, %v999
        %v1001 = vpop.f32.mrb[0].mxu0
        %v1002 = vadd.f32 %v621, %v1001
        %v1003 = vpop.f32.mrb[0].mxu0
        %v1004 = vadd.f32 %v625, %v1003
        %1005 = vmatprep.mubr.bf16.mxu0 0
        %1006 = vmatmul.mubr.bf16.gmra.mrb[0].mxu0 %v575
        %v1007 = vpop.f32.mrb[0].mxu0
        %v1008 = vadd.f32 %v621, %v1007
        %v1009 = vpop.f32.mrb[0].mxu0
        %v1010 = vadd.f32 %v625, %v1009
        %v1011 = vpop.f32.mrb[0].mxu0
        %v1012 = vadd.f32 %v621, %v1011
        %v1013 = vpop.f32.mrb[0].mxu0
        %v1014 = vadd.f32 %v625, %v1013
        %1015 = vdwg.mxu0
        %v1016 = vmax.f32 %v825, 0.0
        %v1017 = vmax.f32 %v827, 0.0
        %v1018 = vmax.f32 %v938, 0.0
        %v1019 = vmax.f32 %v940, 0.0
        %v1020 = vmax.f32 %v829, 0.0
        %v1021 = vmax.f32 %v831, 0.0
        %v1022 = vmax.f32 %v942, 0.0
        %v1023 = vmax.f32 %v944, 0.0
        %v1024 = vmax.f32 %v835, 0.0
        %v1025 = vmax.f32 %v837, 0.0
        %v1026 = vmax.f32 %v948, 0.0
        %v1027 = vmax.f32 %v950, 0.0
        %v1028 = vmax.f32 %v839, 0.0
        %v1029 = vmax.f32 %v841, 0.0
        %v1030 = vmax.f32 %v952, 0.0
        %v1031 = vmax.f32 %v954, 0.0
        %v1032 = vmax.f32 %v845, 0.0
        %v1033 = vmax.f32 %v847, 0.0
        %v1034 = vmax.f32 %v958, 0.0
        %v1035 = vmax.f32 %v960, 0.0
        %v1036 = vmax.f32 %v849, 0.0
        %v1037 = vmax.f32 %v851, 0.0
        %v1038 = vmax.f32 %v962, 0.0
        %v1039 = vmax.f32 %v964, 0.0
        %v1040 = vmax.f32 %v855, 0.0
        %v1041 = vmax.f32 %v857, 0.0
        %v1042 = vmax.f32 %v968, 0.0
        %v1043 = vmax.f32 %v970, 0.0
        %v1044 = vmax.f32 %v859, 0.0
        %v1045 = vmax.f32 %v861, 0.0
        %v1046 = vmax.f32 %v972, 0.0
        %v1047 = vmax.f32 %v974, 0.0
        %v1048 = vmax.f32 %v865, 0.0
        %v1049 = vmax.f32 %v867, 0.0
        %v1050 = vmax.f32 %v978, 0.0
        %v1051 = vmax.f32 %v980, 0.0
        %v1052 = vmax.f32 %v869, 0.0
        %v1053 = vmax.f32 %v871, 0.0
        %v1054 = vmax.f32 %v982, 0.0
        %v1055 = vmax.f32 %v984, 0.0
        %v1056 = vmax.f32 %v875, 0.0
        %v1057 = vmax.f32 %v877, 0.0
        %v1058 = vmax.f32 %v988, 0.0
        %v1059 = vmax.f32 %v990, 0.0
        %v1060 = vmax.f32 %v879, 0.0
        %v1061 = vmax.f32 %v881, 0.0
        %v1062 = vmax.f32 %v992, 0.0
        %v1063 = vmax.f32 %v994, 0.0
        %v1064 = vmax.f32 %v885, 0.0
        %v1065 = vmax.f32 %v887, 0.0
        %v1066 = vmax.f32 %v998, 0.0
        %v1067 = vmax.f32 %v1000, 0.0
        %v1068 = vmax.f32 %v889, 0.0
        %v1069 = vmax.f32 %v891, 0.0
        %v1070 = vmax.f32 %v1002, 0.0
        %v1071 = vmax.f32 %v1004, 0.0
        %v1072 = vmax.f32 %v895, 0.0
        %v1073 = vmax.f32 %v897, 0.0
        %v1074 = vmax.f32 %v1008, 0.0
        %v1075 = vmax.f32 %v1010, 0.0
        %v1076 = vmax.f32 %v899, 0.0
        %v1077 = vmax.f32 %v901, 0.0
        %v1078 = vmax.f32 %v1012, 0.0
        %v1079 = vmax.f32 %v1014, 0.0
        %v1080 = vpack.c.bf16 %v1020, %v1016
        %v1081 = vpack.c.bf16 %v1021, %v1017
        %v1082 = vpack.c.bf16 %v1022, %v1018
        %v1083 = vpack.c.bf16 %v1023, %v1019
        %v1084 = vpack.c.bf16 %v1028, %v1024
        %v1085 = vpack.c.bf16 %v1029, %v1025
        %v1086 = vpack.c.bf16 %v1030, %v1026
        %v1087 = vpack.c.bf16 %v1031, %v1027
        %v1088 = vpack.c.bf16 %v1036, %v1032
        %v1089 = vpack.c.bf16 %v1037, %v1033
        %v1090 = vpack.c.bf16 %v1038, %v1034
        %v1091 = vpack.c.bf16 %v1039, %v1035
        %v1092 = vpack.c.bf16 %v1044, %v1040
        %v1093 = vpack.c.bf16 %v1045, %v1041
        %v1094 = vpack.c.bf16 %v1046, %v1042
        %v1095 = vpack.c.bf16 %v1047, %v1043
        %v1096 = vpack.c.bf16 %v1052, %v1048
        %v1097 = vpack.c.bf16 %v1053, %v1049
        %v1098 = vpack.c.bf16 %v1054, %v1050
        %v1099 = vpack.c.bf16 %v1055, %v1051
        %v1100 = vpack.c.bf16 %v1060, %v1056
        %v1101 = vpack.c.bf16 %v1061, %v1057
        %v1102 = vpack.c.bf16 %v1062, %v1058
        %v1103 = vpack.c.bf16 %v1063, %v1059
        %v1104 = vpack.c.bf16 %v1068, %v1064
        %v1105 = vpack.c.bf16 %v1069, %v1065
        %v1106 = vpack.c.bf16 %v1070, %v1066
        %v1107 = vpack.c.bf16 %v1071, %v1067
        %v1108 = vpack.c.bf16 %v1076, %v1072
        %v1109 = vpack.c.bf16 %v1077, %v1073
        %v1110 = vpack.c.bf16 %v1078, %v1074
        %v1111 = vpack.c.bf16 %v1079, %v1075
        %v1112 = vld [vmem:[#allocation7] sm:$0xf]
        %v1113 = vld [vmem:[#allocation7 + $0x4] sm:$0xf]
        %v1114 = vld [vmem:[#allocation7 + $0x8] sm:$0xf]
        %v1115 = vld [vmem:[#allocation7 + $0xc] sm:$0xf]
        %v1116 = vld [vmem:[#allocation7 + $0x10] sm:$0xf]
        %v1117 = vld [vmem:[#allocation7 + $0x14] sm:$0xf]
        %v1118 = vld [vmem:[#allocation7 + $0x18] sm:$0xf]
        %v1119 = vld [vmem:[#allocation7 + $0x1c] sm:$0xf]
        %v1120 = vld [vmem:[#allocation7 + $0x20] sm:$0xf]
        %v1121 = vld [vmem:[#allocation7 + $0x24] sm:$0xf]
        %v1122 = vld [vmem:[#allocation7 + $0x28] sm:$0xf]
        %v1123 = vld [vmem:[#allocation7 + $0x2c] sm:$0xf]
        %v1124 = vld [vmem:[#allocation7 + $0x30] sm:$0xf]
        %v1125 = vld [vmem:[#allocation7 + $0x34] sm:$0xf]
        %v1126 = vld [vmem:[#allocation7 + $0x38] sm:$0xf]
        %v1127 = vld [vmem:[#allocation7 + $0x3c] sm:$0xf]
        %v1128 = vld [vmem:[#allocation7 + $0x40] sm:$0xf]
        %v1129 = vld [vmem:[#allocation7 + $0x44] sm:$0xf]
        %v1130 = vld [vmem:[#allocation7 + $0x48] sm:$0xf]
        %v1131 = vld [vmem:[#allocation7 + $0x4c] sm:$0xf]
        %v1132 = vld [vmem:[#allocation7 + $0x50] sm:$0xf]
        %v1133 = vld [vmem:[#allocation7 + $0x54] sm:$0xf]
        %v1134 = vld [vmem:[#allocation7 + $0x58] sm:$0xf]
        %v1135 = vld [vmem:[#allocation7 + $0x5c] sm:$0xf]
        %v1136 = vld [vmem:[#allocation7 + $0x60] sm:$0xf]
        %v1137 = vld [vmem:[#allocation7 + $0x64] sm:$0xf]
        %v1138 = vld [vmem:[#allocation7 + $0x68] sm:$0xf]
        %v1139 = vld [vmem:[#allocation7 + $0x6c] sm:$0xf]
        %v1140 = vld [vmem:[#allocation7 + $0x70] sm:$0xf]
        %v1141 = vld [vmem:[#allocation7 + $0x74] sm:$0xf]
        %v1142 = vld [vmem:[#allocation7 + $0x78] sm:$0xf]
        %v1143 = vld [vmem:[#allocation7 + $0x7c] sm:$0xf]
        %v1144 = vld [vmem:[#allocation7 + $0x80] sm:$0xf]
        %v1145 = vld [vmem:[#allocation7 + $0x84] sm:$0xf]
        %v1146 = vld [vmem:[#allocation7 + $0x88] sm:$0xf]
        %v1147 = vld [vmem:[#allocation7 + $0x8c] sm:$0xf]
        %v1148 = vld [vmem:[#allocation7 + $0x90] sm:$0xf]
        %v1149 = vld [vmem:[#allocation7 + $0x94] sm:$0xf]
        %v1150 = vld [vmem:[#allocation7 + $0x98] sm:$0xf]
        %v1151 = vld [vmem:[#allocation7 + $0x9c] sm:$0xf]
        %v1152 = vld [vmem:[#allocation7 + $0xa0] sm:$0xf]
        %v1153 = vld [vmem:[#allocation7 + $0xa4] sm:$0xf]
        %v1154 = vld [vmem:[#allocation7 + $0xa8] sm:$0xf]
        %v1155 = vld [vmem:[#allocation7 + $0xac] sm:$0xf]
        %v1156 = vld [vmem:[#allocation7 + $0xb0] sm:$0xf]
        %v1157 = vld [vmem:[#allocation7 + $0xb4] sm:$0xf]
        %v1158 = vld [vmem:[#allocation7 + $0xb8] sm:$0xf]
        %v1159 = vld [vmem:[#allocation7 + $0xbc] sm:$0xf]
        %v1160 = vld [vmem:[#allocation7 + $0xc0] sm:$0xf]
        %v1161 = vld [vmem:[#allocation7 + $0xc4] sm:$0xf]
        %v1162 = vld [vmem:[#allocation7 + $0xc8] sm:$0xf]
        %v1163 = vld [vmem:[#allocation7 + $0xcc] sm:$0xf]
        %v1164 = vld [vmem:[#allocation7 + $0xd0] sm:$0xf]
        %v1165 = vld [vmem:[#allocation7 + $0xd4] sm:$0xf]
        %v1166 = vld [vmem:[#allocation7 + $0xd8] sm:$0xf]
        %v1167 = vld [vmem:[#allocation7 + $0xdc] sm:$0xf]
        %v1168 = vld [vmem:[#allocation7 + $0xe0] sm:$0xf]
        %v1169 = vld [vmem:[#allocation7 + $0xe4] sm:$0xf]
        %v1170 = vld [vmem:[#allocation7 + $0xe8] sm:$0xf]
        %v1171 = vld [vmem:[#allocation7 + $0xec] sm:$0xf]
        %v1172 = vld [vmem:[#allocation7 + $0xf0] sm:$0xf]
        %v1173 = vld [vmem:[#allocation7 + $0xf4] sm:$0xf]
        %v1174 = vld [vmem:[#allocation7 + $0xf8] sm:$0xf]
        %v1175 = vld [vmem:[#allocation7 + $0xfc] sm:$0xf]
        %v1176 = vld [vmem:[%s6] sm:$0x1]
        %v1178 = vlaneseq
        %v1179 = vshrl.u32 %v1178, 7
        %v1180 = vsub.s32 0, %v1179
        %v1181 = vrot.slane %v1176, %v1180
        %v1247 = vunpack.c.l.b16 %v1112
        %v1248 = vunpack.c.l.b16 %v1113
        %v1249 = vunpack.c.l.b16 %v1114
        %v1250 = vunpack.c.l.b16 %v1115
        %v1251 = vunpack.c.l.b16 %v1116
        %v1252 = vunpack.c.l.b16 %v1117
        %v1253 = vunpack.c.l.b16 %v1118
        %v1254 = vunpack.c.l.b16 %v1119
        %v1255 = vunpack.c.l.b16 %v1120
        %v1256 = vunpack.c.l.b16 %v1121
        %v1257 = vunpack.c.l.b16 %v1122
        %v1258 = vunpack.c.l.b16 %v1123
        %v1259 = vunpack.c.l.b16 %v1124
        %v1260 = vunpack.c.l.b16 %v1125
        %v1261 = vunpack.c.l.b16 %v1126
        %v1262 = vunpack.c.l.b16 %v1127
        %v1263 = vunpack.c.l.b16 %v1128
        %v1264 = vunpack.c.l.b16 %v1129
        %v1265 = vunpack.c.l.b16 %v1130
        %v1266 = vunpack.c.l.b16 %v1131
        %v1267 = vunpack.c.l.b16 %v1132
        %v1268 = vunpack.c.l.b16 %v1133
        %v1269 = vunpack.c.l.b16 %v1134
        %v1270 = vunpack.c.l.b16 %v1135
        %v1271 = vunpack.c.l.b16 %v1136
        %v1272 = vunpack.c.l.b16 %v1137
        %v1273 = vunpack.c.l.b16 %v1138
        %v1274 = vunpack.c.l.b16 %v1139
        %v1275 = vunpack.c.l.b16 %v1140
        %v1276 = vunpack.c.l.b16 %v1141
        %v1277 = vunpack.c.l.b16 %v1142
        %v1278 = vunpack.c.l.b16 %v1143
        %v1279 = vunpack.c.l.b16 %v1144
        %v1280 = vunpack.c.l.b16 %v1145
        %v1281 = vunpack.c.l.b16 %v1146
        %v1282 = vunpack.c.l.b16 %v1147
        %v1283 = vunpack.c.l.b16 %v1148
        %v1284 = vunpack.c.l.b16 %v1149
        %v1285 = vunpack.c.l.b16 %v1150
        %v1286 = vunpack.c.l.b16 %v1151
        %v1287 = vunpack.c.l.b16 %v1152
        %v1288 = vunpack.c.l.b16 %v1153
        %v1289 = vunpack.c.l.b16 %v1154
        %v1290 = vunpack.c.l.b16 %v1155
        %v1291 = vunpack.c.l.b16 %v1156
        %v1292 = vunpack.c.l.b16 %v1157
        %v1293 = vunpack.c.l.b16 %v1158
        %v1294 = vunpack.c.l.b16 %v1159
        %v1295 = vunpack.c.l.b16 %v1160
        %v1296 = vunpack.c.l.b16 %v1161
        %v1297 = vunpack.c.l.b16 %v1162
        %v1298 = vunpack.c.l.b16 %v1163
        %v1299 = vunpack.c.l.b16 %v1164
        %v1300 = vunpack.c.l.b16 %v1165
        %v1301 = vunpack.c.l.b16 %v1166
        %v1302 = vunpack.c.l.b16 %v1167
        %v1303 = vunpack.c.l.b16 %v1168
        %v1304 = vunpack.c.l.b16 %v1169
        %v1305 = vunpack.c.l.b16 %v1170
        %v1306 = vunpack.c.l.b16 %v1171
        %v1307 = vunpack.c.l.b16 %v1172
        %v1308 = vunpack.c.l.b16 %v1173
        %v1309 = vunpack.c.l.b16 %v1174
        %v1310 = vunpack.c.l.b16 %v1175
        %v1311 = vpack.c.b16 %v1248, %v1247
        %v1312 = vpack.c.b16 %v1250, %v1249
        %v1313 = vpack.c.b16 %v1252, %v1251
        %v1314 = vpack.c.b16 %v1254, %v1253
        %v1315 = vpack.c.b16 %v1256, %v1255
        %v1316 = vpack.c.b16 %v1258, %v1257
        %v1317 = vpack.c.b16 %v1260, %v1259
        %v1318 = vpack.c.b16 %v1262, %v1261
        %v1319 = vpack.c.b16 %v1264, %v1263
        %v1320 = vpack.c.b16 %v1266, %v1265
        %v1321 = vpack.c.b16 %v1268, %v1267
        %v1322 = vpack.c.b16 %v1270, %v1269
        %v1323 = vpack.c.b16 %v1272, %v1271
        %v1324 = vpack.c.b16 %v1274, %v1273
        %v1325 = vpack.c.b16 %v1276, %v1275
        %v1326 = vpack.c.b16 %v1278, %v1277
        %v1327 = vpack.c.b16 %v1280, %v1279
        %v1328 = vpack.c.b16 %v1282, %v1281
        %v1329 = vpack.c.b16 %v1284, %v1283
        %v1330 = vpack.c.b16 %v1286, %v1285
        %v1331 = vpack.c.b16 %v1288, %v1287
        %v1332 = vpack.c.b16 %v1290, %v1289
        %v1333 = vpack.c.b16 %v1292, %v1291
        %v1334 = vpack.c.b16 %v1294, %v1293
        %v1335 = vpack.c.b16 %v1296, %v1295
        %v1336 = vpack.c.b16 %v1298, %v1297
        %v1337 = vpack.c.b16 %v1300, %v1299
        %v1338 = vpack.c.b16 %v1302, %v1301
        %v1339 = vpack.c.b16 %v1304, %v1303
        %v1340 = vpack.c.b16 %v1306, %v1305
        %v1341 = vpack.c.b16 %v1308, %v1307
        %v1342 = vpack.c.b16 %v1310, %v1309
        %1375 = vmatprep.subr.bf16.mxu0 0
        %1376 = vmatpush1.bf16.msra.mxu0 %v1311
        %1377 = vmatprep.subr.bf16.mxu0 0
        %1378 = vmatpush1.bf16.msra.mxu0 %v1312
        %1379 = vmatprep.subr.bf16.mxu0 0
        %1380 = vmatpush1.bf16.msra.mxu0 %v1313
        %1381 = vmatprep.subr.bf16.mxu0 0
        %1382 = vmatpush1.bf16.msra.mxu0 %v1314
        %1383 = vmatprep.subr.bf16.mxu0 0
        %1384 = vmatpush1.bf16.msra.mxu0 %v1315
        %1385 = vmatprep.subr.bf16.mxu0 0
        %1386 = vmatpush1.bf16.msra.mxu0 %v1316
        %1387 = vmatprep.subr.bf16.mxu0 0
        %1388 = vmatpush1.bf16.msra.mxu0 %v1317
        %1389 = vmatprep.subr.bf16.mxu0 0
        %1390 = vmatpush1.bf16.msra.mxu0 %v1318
        %1391 = vmatprep.subr.bf16.mxu0 0
        %1392 = vmatpush1.bf16.msra.mxu0 %v1319
        %1393 = vmatprep.subr.bf16.mxu0 0
        %1394 = vmatpush1.bf16.msra.mxu0 %v1320
        %1395 = vmatprep.subr.bf16.mxu0 0
        %1396 = vmatpush1.bf16.msra.mxu0 %v1321
        %1397 = vmatprep.subr.bf16.mxu0 0
        %1398 = vmatpush1.bf16.msra.mxu0 %v1322
        %1399 = vmatprep.subr.bf16.mxu0 0
        %1400 = vmatpush1.bf16.msra.mxu0 %v1323
        %1401 = vmatprep.subr.bf16.mxu0 0
        %1402 = vmatpush1.bf16.msra.mxu0 %v1324
        %1403 = vmatprep.subr.bf16.mxu0 0
        %1404 = vmatpush1.bf16.msra.mxu0 %v1325
        %1405 = vmatprep.subr.bf16.mxu0 0
        %1406 = vmatpush1.bf16.msra.mxu0 %v1326
        %1407 = vmatprep.mubr.bf16.mxu0 %v1081
        %1408 = vmatmul.mubr.bf16.gmra.mrb[0].mxu0 %v1080
        %v1409 = vpop.f32.mrb[0].mxu0
        %v1410 = vadd.f32 %v1181, %v1409
        %v1411 = vpop.f32.mrb[0].mxu0
        %v1412 = vpop.f32.mrb[0].mxu0
        %v1413 = vadd.f32 %v1181, %v1412
        %v1414 = vpop.f32.mrb[0].mxu0
        %1415 = vmatprep.mubr.bf16.mxu0 %v1085
        %1416 = vmatmul.mubr.bf16.gmra.mrb[0].mxu0 %v1084
        %v1417 = vpop.f32.mrb[0].mxu0
        %v1418 = vadd.f32 %v1181, %v1417
        %v1419 = vpop.f32.mrb[0].mxu0
        %v1420 = vpop.f32.mrb[0].mxu0
        %v1421 = vadd.f32 %v1181, %v1420
        %v1422 = vpop.f32.mrb[0].mxu0
        %1423 = vmatprep.mubr.bf16.mxu0 %v1089
        %1424 = vmatmul.mubr.bf16.gmra.mrb[0].mxu0 %v1088
        %v1425 = vpop.f32.mrb[0].mxu0
        %v1426 = vadd.f32 %v1181, %v1425
        %v1427 = vpop.f32.mrb[0].mxu0
        %v1428 = vpop.f32.mrb[0].mxu0
        %v1429 = vadd.f32 %v1181, %v1428
        %v1430 = vpop.f32.mrb[0].mxu0
        %1431 = vmatprep.mubr.bf16.mxu0 %v1093
        %1432 = vmatmul.mubr.bf16.gmra.mrb[0].mxu0 %v1092
        %v1433 = vpop.f32.mrb[0].mxu0
        %v1434 = vadd.f32 %v1181, %v1433
        %v1435 = vpop.f32.mrb[0].mxu0
        %v1436 = vpop.f32.mrb[0].mxu0
        %v1437 = vadd.f32 %v1181, %v1436
        %v1438 = vpop.f32.mrb[0].mxu0
        %1439 = vmatprep.mubr.bf16.mxu0 %v1097
        %1440 = vmatmul.mubr.bf16.gmra.mrb[0].mxu0 %v1096
        %v1441 = vpop.f32.mrb[0].mxu0
        %v1442 = vadd.f32 %v1181, %v1441
        %v1443 = vpop.f32.mrb[0].mxu0
        %v1444 = vpop.f32.mrb[0].mxu0
        %v1445 = vadd.f32 %v1181, %v1444
        %v1446 = vpop.f32.mrb[0].mxu0
        %1447 = vmatprep.mubr.bf16.mxu0 %v1101
        %1448 = vmatmul.mubr.bf16.gmra.mrb[0].mxu0 %v1100
        %v1449 = vpop.f32.mrb[0].mxu0
        %v1450 = vadd.f32 %v1181, %v1449
        %v1451 = vpop.f32.mrb[0].mxu0
        %v1452 = vpop.f32.mrb[0].mxu0
        %v1453 = vadd.f32 %v1181, %v1452
        %v1454 = vpop.f32.mrb[0].mxu0
        %1455 = vmatprep.mubr.bf16.mxu0 %v1105
        %1456 = vmatmul.mubr.bf16.gmra.mrb[0].mxu0 %v1104
        %v1457 = vpop.f32.mrb[0].mxu0
        %v1458 = vadd.f32 %v1181, %v1457
        %v1459 = vpop.f32.mrb[0].mxu0
        %v1460 = vpop.f32.mrb[0].mxu0
        %v1461 = vadd.f32 %v1181, %v1460
        %v1462 = vpop.f32.mrb[0].mxu0
        %1463 = vmatprep.mubr.bf16.mxu0 %v1109
        %1464 = vmatmul.mubr.bf16.gmra.mrb[0].mxu0 %v1108
        %v1465 = vpop.f32.mrb[0].mxu0
        %v1466 = vadd.f32 %v1181, %v1465
        %v1467 = vpop.f32.mrb[0].mxu0
        %v1468 = vpop.f32.mrb[0].mxu0
        %v1469 = vadd.f32 %v1181, %v1468
        %v1470 = vpop.f32.mrb[0].mxu0
        %1471 = vdwg.mxu0
        %1472 = vmatprep.subr.bf16.mxu0 0
        %1473 = vmatpush1.bf16.msra.mxu0 %v1327
        %1474 = vmatprep.subr.bf16.mxu0 0
        %1475 = vmatpush1.bf16.msra.mxu0 %v1328
        %1476 = vmatprep.subr.bf16.mxu0 0
        %1477 = vmatpush1.bf16.msra.mxu0 %v1329
        %1478 = vmatprep.subr.bf16.mxu0 0
        %1479 = vmatpush1.bf16.msra.mxu0 %v1330
        %1480 = vmatprep.subr.bf16.mxu0 0
        %1481 = vmatpush1.bf16.msra.mxu0 %v1331
        %1482 = vmatprep.subr.bf16.mxu0 0
        %1483 = vmatpush1.bf16.msra.mxu0 %v1332
        %1484 = vmatprep.subr.bf16.mxu0 0
        %1485 = vmatpush1.bf16.msra.mxu0 %v1333
        %1486 = vmatprep.subr.bf16.mxu0 0
        %1487 = vmatpush1.bf16.msra.mxu0 %v1334
        %1488 = vmatprep.subr.bf16.mxu0 0
        %1489 = vmatpush1.bf16.msra.mxu0 %v1335
        %1490 = vmatprep.subr.bf16.mxu0 0
        %1491 = vmatpush1.bf16.msra.mxu0 %v1336
        %1492 = vmatprep.subr.bf16.mxu0 0
        %1493 = vmatpush1.bf16.msra.mxu0 %v1337
        %1494 = vmatprep.subr.bf16.mxu0 0
        %1495 = vmatpush1.bf16.msra.mxu0 %v1338
        %1496 = vmatprep.subr.bf16.mxu0 0
        %1497 = vmatpush1.bf16.msra.mxu0 %v1339
        %1498 = vmatprep.subr.bf16.mxu0 0
        %1499 = vmatpush1.bf16.msra.mxu0 %v1340
        %1500 = vmatprep.subr.bf16.mxu0 0
        %1501 = vmatpush1.bf16.msra.mxu0 %v1341
        %1502 = vmatprep.subr.bf16.mxu0 0
        %1503 = vmatpush1.bf16.msra.mxu0 %v1342
        %1504 = vmatprep.mubr.bf16.mxu0 %v1083
        %1505 = vmatmul.mubr.bf16.gmra.mrb[0].mxu0 %v1082
        %v1506 = vpop.f32.mrb[0].mxu0
        %v1507 = vadd.f32 %v1410, %v1506
        %v1508 = vpop.f32.mrb[0].mxu0
        %v1509 = vpop.f32.mrb[0].mxu0
        %v1510 = vadd.f32 %v1413, %v1509
        %v1511 = vpop.f32.mrb[0].mxu0
        %1512 = vmatprep.mubr.bf16.mxu0 %v1087
        %1513 = vmatmul.mubr.bf16.gmra.mrb[0].mxu0 %v1086
        %v1514 = vpop.f32.mrb[0].mxu0
        %v1515 = vadd.f32 %v1418, %v1514
        %v1516 = vpop.f32.mrb[0].mxu0
        %v1517 = vpop.f32.mrb[0].mxu0
        %v1518 = vadd.f32 %v1421, %v1517
        %v1519 = vpop.f32.mrb[0].mxu0
        %1520 = vmatprep.mubr.bf16.mxu0 %v1091
        %1521 = vmatmul.mubr.bf16.gmra.mrb[0].mxu0 %v1090
        %v1522 = vpop.f32.mrb[0].mxu0
        %v1523 = vadd.f32 %v1426, %v1522
        %v1524 = vpop.f32.mrb[0].mxu0
        %v1525 = vpop.f32.mrb[0].mxu0
        %v1526 = vadd.f32 %v1429, %v1525
        %v1527 = vpop.f32.mrb[0].mxu0
        %1528 = vmatprep.mubr.bf16.mxu0 %v1095
        %1529 = vmatmul.mubr.bf16.gmra.mrb[0].mxu0 %v1094
        %v1530 = vpop.f32.mrb[0].mxu0
        %v1531 = vadd.f32 %v1434, %v1530
        %v1532 = vpop.f32.mrb[0].mxu0
        %v1533 = vpop.f32.mrb[0].mxu0
        %v1534 = vadd.f32 %v1437, %v1533
        %v1535 = vpop.f32.mrb[0].mxu0
        %1536 = vmatprep.mubr.bf16.mxu0 %v1099
        %1537 = vmatmul.mubr.bf16.gmra.mrb[0].mxu0 %v1098
        %v1538 = vpop.f32.mrb[0].mxu0
        %v1539 = vadd.f32 %v1442, %v1538
        %v1540 = vpop.f32.mrb[0].mxu0
        %v1541 = vpop.f32.mrb[0].mxu0
        %v1542 = vadd.f32 %v1445, %v1541
        %v1543 = vpop.f32.mrb[0].mxu0
        %1544 = vmatprep.mubr.bf16.mxu0 %v1103
        %1545 = vmatmul.mubr.bf16.gmra.mrb[0].mxu0 %v1102
        %v1546 = vpop.f32.mrb[0].mxu0
        %v1547 = vadd.f32 %v1450, %v1546
        %v1548 = vpop.f32.mrb[0].mxu0
        %v1549 = vpop.f32.mrb[0].mxu0
        %v1550 = vadd.f32 %v1453, %v1549
        %v1551 = vpop.f32.mrb[0].mxu0
        %1552 = vmatprep.mubr.bf16.mxu0 %v1107
        %1553 = vmatmul.mubr.bf16.gmra.mrb[0].mxu0 %v1106
        %v1554 = vpop.f32.mrb[0].mxu0
        %v1555 = vadd.f32 %v1458, %v1554
        %v1556 = vpop.f32.mrb[0].mxu0
        %v1557 = vpop.f32.mrb[0].mxu0
        %v1558 = vadd.f32 %v1461, %v1557
        %v1559 = vpop.f32.mrb[0].mxu0
        %1560 = vmatprep.mubr.bf16.mxu0 %v1111
        %1561 = vmatmul.mubr.bf16.gmra.mrb[0].mxu0 %v1110
        %v1562 = vpop.f32.mrb[0].mxu0
        %v1563 = vadd.f32 %v1466, %v1562
        %v1564 = vpop.f32.mrb[0].mxu0
        %v1565 = vpop.f32.mrb[0].mxu0
        %v1566 = vadd.f32 %v1469, %v1565
        %v1567 = vpop.f32.mrb[0].mxu0
        %1568 = vdwg.mxu0
        %1569 = vst [vmem:[%s325] sm:$0xff] %v1507
        %1570 = vst [vmem:[%s325 + $0x8] sm:$0xff] %v1510
        %1571 = vst [vmem:[%s325 + $0x10] sm:$0xff] %v1515
        %1572 = vst [vmem:[%s325 + $0x18] sm:$0xff] %v1518
        %1573 = vst [vmem:[%s325 + $0x20] sm:$0xff] %v1523
        %1574 = vst [vmem:[%s325 + $0x28] sm:$0xff] %v1526
        %1575 = vst [vmem:[%s325 + $0x30] sm:$0xff] %v1531
        %1576 = vst [vmem:[%s325 + $0x38] sm:$0xff] %v1534
        %1577 = vst [vmem:[%s325 + $0x40] sm:$0xff] %v1539
        %1578 = vst [vmem:[%s325 + $0x48] sm:$0xff] %v1542
        %1579 = vst [vmem:[%s325 + $0x50] sm:$0xff] %v1547
        %1580 = vst [vmem:[%s325 + $0x58] sm:$0xff] %v1550
        %1581 = vst [vmem:[%s325 + $0x60] sm:$0xff] %v1555
        %1582 = vst [vmem:[%s325 + $0x68] sm:$0xff] %v1558
        %1583 = vst [vmem:[%s325 + $0x70] sm:$0xff] %v1563
        %1584 = vst [vmem:[%s325 + $0x78] sm:$0xff] %v1566
        %s1585 = sand.u32 %s185, 1
        %s1586 = scalar_lea.sflag [#allocation4], %s1585
        %s1587 = sand.u32 %s185, 1
        %s1588 = smul.addr %s1587, 128
        %s1589 = scalar_lea.vmem [#allocation8], %s1588
        // Predicated region
        $region61: #{tpu_custom_call.1} parent=47 // pred_check
          %p1590 = pneg %p195
        $region62: #{tpu_custom_call.1} parent=47 // pred_check_branch
          %1592 = sbr.rel (%p1590) target = $region64
        $region63: #{tpu_custom_call.1} parent=47 // pred_region
          %s1593 = smul.u32 16, %s25
          %s1595 = ssub.s32 2048, 2048
          %1596 = vsyncadd %s1586, %s1595
          %s1597 = smul.addr %s1593, 128
          %s1598 = scalar_lea.hbm %s7, %s1597
          %s1599 = sshll.u32 %s1589, 4
          %s1600 = int_to_ptr.vmem [resolvable:$true] %s1599
          %1605 = dma.vmem_to_hbm [thread:$0]  %s1600, 2048, %s1598, %s1586, 128, 128, 8
        $region64: #{tpu_custom_call.1} parent=47 // pred_fallthru
          _
      $region48: #{tpu_custom_call.1} parent=5 // pred_fallthru
        _
      %p1606 = scmp.le.s32.totalorder 2, %s20
      // Predicated region
      $region65: #{tpu_custom_call.1} parent=5 // pred_check
        %p1607 = pneg %p1606
      $region66: #{tpu_custom_call.1} parent=5 // pred_check_branch
        %1609 = sbr.rel (%p1607) target = $region68
      $region67: #{tpu_custom_call.1} parent=5 // pred_region
        %s1610 = ssub.s32 %s20, 2
        // Predicated region
        $region69: #{tpu_custom_call.1} parent=67 // pred_check
          %p1611 = pneg %p201
        $region70: #{tpu_custom_call.1} parent=67 // pred_check_branch
          %1613 = sbr.rel (%p1611) target = $region72
        $region71: #{tpu_custom_call.1} parent=67 // pred_region
          %s1614 = sand.u32 %s186, 1
          %s1615 = scalar_lea.sflag [#allocation4], %s1614
          %s1616 = sand.u32 %s186, 1
          %s1617 = smul.addr %s1616, 128
          %s1618 = scalar_lea.vmem [#allocation8], %s1617
          %1619 = dma.done %s1615, 2048
        $region72: #{tpu_custom_call.1} parent=67 // pred_fallthru
          _
      $region68: #{tpu_custom_call.1} parent=5 // pred_fallthru
        _
    $region6: #{tpu_custom_call.1} parent=1 // loop_footer
      %s24 = sadd.s32 1, %s20
    $region7: #{tpu_custom_call.1} parent=1 // loop_footer_branch
      %19 = sbr.rel target = $region3
    $region8: #{tpu_custom_call.1} parent=1 // loop_exit
      _
    %1620 = vsyncpa [#allocation3], 1
    %s1621 = scalar_lea.sflag [#allocation3], 1
    %1622 = vsyncpa %s1621, 1
    %1623 = vsyncpa [#allocation6], 1
    %1624 = vsyncpa [#allocation4], 1
    %s1625 = scalar_lea.sflag [#allocation4], 1
    %1626 = vsyncpa %s1625, 1

</llo_original>
